<compile_context>
chip_gen: v6e
topology: v6e:2x2x1
jax: 0.10.0
libtpu: 0.0.40
codegen_flags: <defaults>
</compile_context>

<pallas_src>
import functools

import jax
import jax.numpy as jnp
import numpy as np
from jax.experimental import pallas as pl
from jax.experimental.pallas import tpu as pltpu


def _round_up(x, m):
    return ((x + m - 1) // m) * m


def _pack_rows(pieces, width, dtype, row_align):
    """Stack 2-D arrays along the sublane axis into one lane-`width` slab.

    Each piece starts at a row offset aligned to `row_align` (8 for f32,
    16 for bf16) so in-kernel static slices never cross a tile boundary.
    Returns (slab, per-piece row offsets).  Host-side, runs once.
    """
    offs, rows = [], 0
    for p in pieces:
        offs.append(rows)
        rows += _round_up(int(p.shape[0]), row_align)
    rows = _round_up(max(rows, row_align), row_align)
    slab = np.zeros((rows, width), dtype=np.float32)
    for p, o in zip(pieces, offs):
        arr = np.asarray(p, dtype=np.float32)
        slab[o:o + arr.shape[0], :arr.shape[1]] = arr
    return jnp.asarray(slab, dtype=dtype), offs


# ----------------------------------------------------------------------------
# Fused forward kernel factory.
#   refs = tokens(SMEM), emb_table(VMEM, (V,1,D)), w_slab(bf16), v_slab(f32),
#          y_out, x_scratch, hs_scratch
# ----------------------------------------------------------------------------
def _make_fused_kernel(meta):
    T, B, B_pad = meta["T"], meta["B"], meta["B_pad"]
    D, H = meta["D"], meta["H"]
    num_layers = meta["num_layers"]
    sa = meta["self_attention"]
    in_dims = meta["in_dims"]
    ih_off, hh_off, b_off = meta["ih_off"], meta["hh_off"], meta["b_off"]
    F, out_pad = meta["attn_dim"], meta["out_pad"]
    fc_off, bfc_off = meta["fc_off"], meta["bfc_off"]
    lin_off, blin_off = meta["lin_off"], meta["blin_off"]
    d_off, bd_off = meta["d_off"], meta["bd_off"]
    G = 4 * H

    def kernel(tok_ref, emb_ref, wslab_ref, vslab_ref, y_ref, x_ref, hs_ref):
        # ---- fused embedding gather: tokens in SMEM, table in VMEM ----------
        x_ref[...] = jnp.zeros_like(x_ref)              # zero pad rows once
        for t in range(T):
            for b in range(B):
                tok = tok_ref[b, t]                     # scalar from SMEM
                # dynamic leading-axis gather of one embedding row -> (1, D)
                x_ref[pl.ds(t * B_pad + b, 1), :] = emb_ref[tok]
        # TODO(synk): nn.Dropout(0.2) treated as inference-mode identity.

        cur = x_ref[...]                                # (T*B_pad, D) f32
        h_last = None
        for li in range(num_layers):
            wih = wslab_ref[ih_off[li]:ih_off[li] + in_dims[li], :G]   # bf16
            whh = wslab_ref[hh_off[li]:hh_off[li] + H, :G]             # bf16
            bias = vslab_ref[b_off[li]:b_off[li] + 1, :G]              # (1, 4H) f32

            # Hoisted input projection: one MXU matmul for the whole sequence.
            gx = jnp.dot(cur.astype(jnp.bfloat16), wih,
                         preferred_element_type=jnp.float32) + bias    # (T*B_pad, 4H)

            h = jnp.zeros((B_pad, H), jnp.float32)
            c = jnp.zeros((B_pad, H), jnp.float32)
            for t in range(T):                          # fully unrolled (T small)
                g = gx[t * B_pad:(t + 1) * B_pad, :] + jnp.dot(
                    h.astype(jnp.bfloat16), whh,
                    preferred_element_type=jnp.float32)                # (B_pad, 4H)
                # Lane-dense EUP: one sigmoid + one tanh over the full gate slab.
                sg = jax.nn.sigmoid(g)
                th = jnp.tanh(g)
                i_g = sg[:, 0 * H:1 * H]
                f_g = sg[:, 1 * H:2 * H]
                g_g = th[:, 2 * H:3 * H]
                o_g = sg[:, 3 * H:4 * H]
                c = f_g * c + i_g * g_g
                h = o_g * jnp.tanh(c)
                hs_ref[t * B_pad:(t + 1) * B_pad, :] = h               # scratch slab
            h_last = h
            if li + 1 < num_layers:
                cur = hs_ref[...]                       # (T*B_pad, H) for next layer

        if sa:
            h_flat = hs_ref[...]                                        # (T*B_pad, H)
            wfc = vslab_ref[fc_off:fc_off + H, :F]                      # (H, F)
            bfc = vslab_ref[bfc_off:bfc_off + 1, :F]                    # (1, F)
            wlin = vslab_ref[lin_off:lin_off + 1, :F]                   # (1, F)
            blin = vslab_ref[blin_off:blin_off + 1, 0:1]                # (1, 1)
            # FC(H -> F) + ReLU as one flat MXU matmul (f32).
            a = jnp.dot(h_flat, wfc, preferred_element_type=jnp.float32) + bfc
            a = jnp.maximum(a, 0.0)                                     # (T*B_pad, F)
            # Linear(F, 1): single cross-lane reduction over the whole slab.
            scores = jnp.sum(a * wlin, axis=-1, keepdims=True) + blin   # (T*B_pad, 1)
            # softmax over the sequence axis, per batch row
            sc = [scores[t * B_pad:(t + 1) * B_pad, :] for t in range(T)]
            m = sc[0]
            for t in range(1, T):
                m = jnp.maximum(m, sc[t])
            es = [jnp.exp(s - m) for s in sc]
            denom = es[0]
            for t in range(1, T):
                denom = denom + es[t]
            num = es[0] * hs_ref[0:B_pad, :]
            for t in range(1, T):
                num = num + es[t] * hs_ref[t * B_pad:(t + 1) * B_pad, :]
            feat = num / denom                                          # (B_pad, H)
        else:
            feat = h_last                                               # (B_pad, H)

        # dense1 (lane-dense padded output; sliced in the wrapper)
        wd = vslab_ref[d_off:d_off + H, :out_pad]
        bd = vslab_ref[bd_off:bd_off + 1, :out_pad]
        y_ref[...] = jnp.dot(feat, wd, preferred_element_type=jnp.float32) + bd

    return kernel


# ----------------------------------------------------------------------------
# Builder: packs weights once (host-side) and returns a jit-able forward.
# ----------------------------------------------------------------------------
def build_qmodel_forward(params, tokens_shape, self_attention):
    B, T = tokens_shape
    D = params["W_emb"].shape[1]
    H = params["lstm"][0][1].shape[0]
    num_layers = len(params["lstm"])
    attn_dim = params["W_fc"].shape[1]
    out_feature = params["W_d"].shape[1]

    B_pad = _round_up(max(B, 8), 8)
    out_pad = _round_up(max(out_feature, 128), 128)

    # --- bf16 slab: all LSTM matmul weights (MXU operands) -------------------
    w_pieces, in_dims = [], []
    for (w_ih, w_hh, _) in params["lstm"]:
        in_dims.append(int(w_ih.shape[0]))
        w_pieces += [w_ih, w_hh]
    width_w = _round_up(4 * H, 128)
    wslab, w_offs = _pack_rows(w_pieces, width_w, jnp.bfloat16, 16)
    ih_off = [w_offs[2 * i] for i in range(num_layers)]
    hh_off = [w_offs[2 * i + 1] for i in range(num_layers)]

    # --- f32 slab: every bias + attention + dense weight ---------------------
    v_pieces = [b for (_, _, b) in params["lstm"]]
    v_pieces += [params["W_fc"], params["b_fc"], params["w_lin"], params["b_lin"],
                 params["W_d"], params["b_d"]]
    width_v = _round_up(max(4 * H, attn_dim, out_pad), 128)
    vslab, v_offs = _pack_rows(v_pieces, width_v, jnp.float32, 8)
    b_off = v_offs[:num_layers]
    fc_off, bfc_off, lin_off, blin_off, d_off, bd_off = v_offs[num_layers:]

    # Embedding table as (V, 1, D) so the in-kernel gather is a dynamic
    # leading-axis index into VMEM.
    w_emb3 = jnp.asarray(params["W_emb"], jnp.float32).reshape(-1, 1, D)

    meta = dict(T=T, B=B, B_pad=B_pad, D=D, H=H, num_layers=num_layers,
                self_attention=bool(self_attention), in_dims=in_dims,
                ih_off=ih_off, hh_off=hh_off, b_off=b_off, attn_dim=attn_dim,
                out_pad=out_pad, fc_off=fc_off, bfc_off=bfc_off,
                lin_off=lin_off, blin_off=blin_off, d_off=d_off, bd_off=bd_off)
    kernel = _make_fused_kernel(meta)

    call = pl.pallas_call(
        kernel,
        out_shape=jax.ShapeDtypeStruct((B_pad, out_pad), jnp.float32),
        in_specs=[
            pl.BlockSpec(memory_space=pltpu.MemorySpace.SMEM),   # tokens
            pl.BlockSpec(memory_space=pltpu.MemorySpace.VMEM),   # embedding table
            pl.BlockSpec(memory_space=pltpu.MemorySpace.VMEM),   # bf16 weight slab
            pl.BlockSpec(memory_space=pltpu.MemorySpace.VMEM),   # f32 weight/bias slab
        ],
        out_specs=pl.BlockSpec(memory_space=pltpu.MemorySpace.VMEM),
        scratch_shapes=[
            pltpu.VMEM((T * B_pad, D), jnp.float32),   # embedded input slab
            pltpu.VMEM((T * B_pad, H), jnp.float32),   # per-layer h sequence slab
        ],
    )

    def forward(tokens):
        y = call(tokens, w_emb3, wslab, vslab)
        return y[:B, :out_feature]

    return forward


# ----------------------------------------------------------------------------
# Pure-JAX reference (f32 everywhere).
# ----------------------------------------------------------------------------
def _lstm_layer_ref(x, w_ih, w_hh, b):
    B, T, D = x.shape
    H = w_hh.shape[0]

    def step(carry, x_t):
        hh, cc = carry
        gates = x_t @ w_ih + hh @ w_hh + b
        i_g = jax.nn.sigmoid(gates[:, :H])
        f_g = jax.nn.sigmoid(gates[:, H:2 * H])
        g_g = jnp.tanh(gates[:, 2 * H:3 * H])
        o_g = jax.nn.sigmoid(gates[:, 3 * H:])
        cc = f_g * cc + i_g * g_g
        hh = o_g * jnp.tanh(cc)
        return (hh, cc), hh

    init = (jnp.zeros((B, H), jnp.float32), jnp.zeros((B, H), jnp.float32))
    (h_last, _), hs = jax.lax.scan(step, init, jnp.transpose(x, (1, 0, 2)))
    return jnp.transpose(hs, (1, 0, 2)), h_last


def qmodel_forward_ref(params, tokens, self_attention):
    x = jnp.take(params["W_emb"], tokens, axis=0)
    h = x
    h_last = None
    for (w_ih, w_hh, b) in params["lstm"]:
        h, h_last = _lstm_layer_ref(h, w_ih, w_hh, b)
    lstm_out = h
    if self_attention:
        a = jnp.maximum(jnp.einsum("bth,hf->btf", lstm_out, params["W_fc"])
                        + params["b_fc"][0], 0.0)
        score = jnp.sum(a * params["w_lin"][0], axis=-1) + params["b_lin"][0, 0]
        alpha = jax.nn.softmax(score, axis=1)
        ctx = jnp.sum(alpha[:, :, None] * lstm_out, axis=1)
        return ctx @ params["W_d"] + params["b_d"][0]
    return h_last @ params["W_d"] + params["b_d"][0]


# ----------------------------------------------------------------------------
# Deterministic parameter construction (synthetic, no checkpoint).
# ----------------------------------------------------------------------------
def make_params(key, vocab, emb_dim, hidden, num_layers, attn_dim, out_feature):
    ks = iter(jax.random.split(key, 6 + 3 * num_layers))
    params = {}
    params["W_emb"] = (jax.random.normal(next(ks), (vocab, emb_dim), jnp.float32)
                       * 0.1)
    lstm = []
    k_init = 1.0 / np.sqrt(hidden)
    in_dim = emb_dim
    for _ in range(num_layers):
        w_ih = jax.random.uniform(next(ks), (in_dim, 4 * hidden), jnp.float32,
                                  -k_init, k_init)
        w_hh = jax.random.uniform(next(ks), (hidden, 4 * hidden), jnp.float32,
                                  -k_init, k_init)
        b = jax.random.uniform(next(ks), (1, 4 * hidden), jnp.float32,
                               -k_init, k_init)            # b_ih + b_hh folded
        lstm.append((w_ih, w_hh, b))
        in_dim = hidden
    params["lstm"] = lstm
    # FC([hidden, attn_dim]) -- init_weights: normal(0, 0.01)
    params["W_fc"] = jax.random.normal(next(ks), (hidden, attn_dim), jnp.float32) * 0.01
    params["b_fc"] = jnp.zeros((1, attn_dim), jnp.float32)
    # Linear(attn_dim, 1) -- normal(0, 0.01)
    params["w_lin"] = jax.random.normal(next(ks), (1, attn_dim), jnp.float32) * 0.01
    params["b_lin"] = jnp.zeros((1, 1), jnp.float32)
    # dense1: Linear(hidden, out_feature)
    params["W_d"] = jax.random.normal(next(ks), (hidden, out_feature), jnp.float32) * 0.1
    params["b_d"] = jnp.zeros((1, out_feature), jnp.float32)
    return params


if __name__ == "__main__":
    # Small shapes consistent with the module's forward.
    VOCAB, EMB_DIM, HIDDEN, NUM_LAYERS = 50, 32, 32, 2
    ATTN_DIM, OUT_FEATURE = 128, 8
    BATCH, SEQ = 2, 8

    key = jax.random.PRNGKey(0)
    k_par, k_tok = jax.random.split(key)
    params = make_params(k_par, VOCAB, EMB_DIM, HIDDEN, NUM_LAYERS,
                         ATTN_DIM, OUT_FEATURE)
    tokens = jax.random.randint(k_tok, (BATCH, SEQ), 0, VOCAB, dtype=jnp.int32)

    ref = jax.jit(functools.partial(qmodel_forward_ref, params),
                  static_argnames="self_attention")

    ok = True
    for sa in (False, True):
        fwd = jax.jit(build_qmodel_forward(params, (BATCH, SEQ), sa))
        y = jax.block_until_ready(fwd(tokens))
        y_ref = jax.block_until_ready(ref(tokens, self_attention=sa))
        if y.shape != (BATCH, OUT_FEATURE):
            ok = False
        if not np.allclose(np.asarray(y), np.asarray(y_ref), rtol=1e-3, atol=1e-3):
            ok = False

    if ok:
        print("KERNEL_OK")
    else:
        print("KERNEL_MISMATCH")
</pallas_src>

<mosaic_0001>
module attributes {stable_mosaic.version = 11 : i64} {
  func.func @kernel(%arg0: memref<2x8xi32, #tpu.memory_space<smem>>, %arg1: memref<50x1x32xf32, #tpu.memory_space<vmem>>, %arg2: memref<128x128xbf16, #tpu.memory_space<vmem>>, %arg3: memref<112x128xf32, #tpu.memory_space<vmem>>, %arg4: memref<8x128xf32, #tpu.memory_space<vmem>>, %arg5: memref<64x32xf32, #tpu.memory_space<vmem>>, %arg6: memref<64x32xf32, #tpu.memory_space<vmem>>) attributes {dimension_semantics = [], scalar_prefetch = 0 : i64, scratch_operands = 2 : i64, tpu.core_type = #tpu.core_type<tc>} {
    %cst = arith.constant 0.000000e+00 : f32
    %0 = vector.broadcast %cst : f32 to vector<64x32xf32>
    %c0 = arith.constant 0 : index
    %c0_0 = arith.constant 0 : index
    %1 = vector.load %arg5[%c0, %c0_0] : memref<64x32xf32, #tpu.memory_space<vmem>>, vector<64x32xf32>
    tpu.vector_store %arg5[%c0, %c0_0], %0 {strides = array<i32>} : memref<64x32xf32, #tpu.memory_space<vmem>>, vector<64x32xf32>,
    %c0_1 = arith.constant 0 : index
    %c0_2 = arith.constant 0 : index
    %2 = memref.load %arg0[%c0_1, %c0_2] : memref<2x8xi32, #tpu.memory_space<smem>>
    %3 = arith.index_cast %2 : i32 to index
    %c0_3 = arith.constant 0 : index
    %c0_4 = arith.constant 0 : index
    %4 = vector.load %arg1[%3, %c0_3, %c0_4] : memref<50x1x32xf32, #tpu.memory_space<vmem>>, vector<1x1x32xf32>
    %5 = vector.shape_cast %4 : vector<1x1x32xf32> to vector<1x32xf32>
    %c0_5 = arith.constant 0 : index
    %c0_6 = arith.constant 0 : index
    %6 = vector.load %arg5[%c0_5, %c0_6] : memref<64x32xf32, #tpu.memory_space<vmem>>, vector<1x32xf32>
    tpu.vector_store %arg5[%c0_5, %c0_6], %5 {strides = array<i32>} : memref<64x32xf32, #tpu.memory_space<vmem>>, vector<1x32xf32>,
    %c1 = arith.constant 1 : index
    %c0_7 = arith.constant 0 : index
    %7 = memref.load %arg0[%c1, %c0_7] : memref<2x8xi32, #tpu.memory_space<smem>>
    %8 = arith.index_cast %7 : i32 to index
    %c0_8 = arith.constant 0 : index
    %c0_9 = arith.constant 0 : index
    %9 = vector.load %arg1[%8, %c0_8, %c0_9] : memref<50x1x32xf32, #tpu.memory_space<vmem>>, vector<1x1x32xf32>
    %10 = vector.shape_cast %9 : vector<1x1x32xf32> to vector<1x32xf32>
    %c1_10 = arith.constant 1 : index
    %c0_11 = arith.constant 0 : index
    %11 = vector.load %arg5[%c1_10, %c0_11] : memref<64x32xf32, #tpu.memory_space<vmem>>, vector<1x32xf32>
    tpu.vector_store %arg5[%c1_10, %c0_11], %10 {strides = array<i32>} : memref<64x32xf32, #tpu.memory_space<vmem>>, vector<1x32xf32>,
    %c0_12 = arith.constant 0 : index
    %c1_13 = arith.constant 1 : index
    %12 = memref.load %arg0[%c0_12, %c1_13] : memref<2x8xi32, #tpu.memory_space<smem>>
    %13 = arith.index_cast %12 : i32 to index
    %c0_14 = arith.constant 0 : index
    %c0_15 = arith.constant 0 : index
    %14 = vector.load %arg1[%13, %c0_14, %c0_15] : memref<50x1x32xf32, #tpu.memory_space<vmem>>, vector<1x1x32xf32>
    %15 = vector.shape_cast %14 : vector<1x1x32xf32> to vector<1x32xf32>
    %c8 = arith.constant 8 : index
    %c0_16 = arith.constant 0 : index
    %16 = vector.load %arg5[%c8, %c0_16] : memref<64x32xf32, #tpu.memory_space<vmem>>, vector<1x32xf32>
    tpu.vector_store %arg5[%c8, %c0_16], %15 {strides = array<i32>} : memref<64x32xf32, #tpu.memory_space<vmem>>, vector<1x32xf32>,
    %c1_17 = arith.constant 1 : index
    %c1_18 = arith.constant 1 : index
    %17 = memref.load %arg0[%c1_17, %c1_18] : memref<2x8xi32, #tpu.memory_space<smem>>
    %18 = arith.index_cast %17 : i32 to index
    %c0_19 = arith.constant 0 : index
    %c0_20 = arith.constant 0 : index
    %19 = vector.load %arg1[%18, %c0_19, %c0_20] : memref<50x1x32xf32, #tpu.memory_space<vmem>>, vector<1x1x32xf32>
    %20 = vector.shape_cast %19 : vector<1x1x32xf32> to vector<1x32xf32>
    %c9 = arith.constant 9 : index
    %c0_21 = arith.constant 0 : index
    %21 = vector.load %arg5[%c9, %c0_21] : memref<64x32xf32, #tpu.memory_space<vmem>>, vector<1x32xf32>
    tpu.vector_store %arg5[%c9, %c0_21], %20 {strides = array<i32>} : memref<64x32xf32, #tpu.memory_space<vmem>>, vector<1x32xf32>,
    %c0_22 = arith.constant 0 : index
    %c2 = arith.constant 2 : index
    %22 = memref.load %arg0[%c0_22, %c2] : memref<2x8xi32, #tpu.memory_space<smem>>
    %23 = arith.index_cast %22 : i32 to index
    %c0_23 = arith.constant 0 : index
    %c0_24 = arith.constant 0 : index
    %24 = vector.load %arg1[%23, %c0_23, %c0_24] : memref<50x1x32xf32, #tpu.memory_space<vmem>>, vector<1x1x32xf32>
    %25 = vector.shape_cast %24 : vector<1x1x32xf32> to vector<1x32xf32>
    %c16 = arith.constant 16 : index
    %c0_25 = arith.constant 0 : index
    %26 = vector.load %arg5[%c16, %c0_25] : memref<64x32xf32, #tpu.memory_space<vmem>>, vector<1x32xf32>
    tpu.vector_store %arg5[%c16, %c0_25], %25 {strides = array<i32>} : memref<64x32xf32, #tpu.memory_space<vmem>>, vector<1x32xf32>,
    %c1_26 = arith.constant 1 : index
    %c2_27 = arith.constant 2 : index
    %27 = memref.load %arg0[%c1_26, %c2_27] : memref<2x8xi32, #tpu.memory_space<smem>>
    %28 = arith.index_cast %27 : i32 to index
    %c0_28 = arith.constant 0 : index
    %c0_29 = arith.constant 0 : index
    %29 = vector.load %arg1[%28, %c0_28, %c0_29] : memref<50x1x32xf32, #tpu.memory_space<vmem>>, vector<1x1x32xf32>
    %30 = vector.shape_cast %29 : vector<1x1x32xf32> to vector<1x32xf32>
    %c17 = arith.constant 17 : index
    %c0_30 = arith.constant 0 : index
    %31 = vector.load %arg5[%c17, %c0_30] : memref<64x32xf32, #tpu.memory_space<vmem>>, vector<1x32xf32>
    tpu.vector_store %arg5[%c17, %c0_30], %30 {strides = array<i32>} : memref<64x32xf32, #tpu.memory_space<vmem>>, vector<1x32xf32>,
    %c0_31 = arith.constant 0 : index
    %c3 = arith.constant 3 : index
    %32 = memref.load %arg0[%c0_31, %c3] : memref<2x8xi32, #tpu.memory_space<smem>>
    %33 = arith.index_cast %32 : i32 to index
    %c0_32 = arith.constant 0 : index
    %c0_33 = arith.constant 0 : index
    %34 = vector.load %arg1[%33, %c0_32, %c0_33] : memref<50x1x32xf32, #tpu.memory_space<vmem>>, vector<1x1x32xf32>
    %35 = vector.shape_cast %34 : vector<1x1x32xf32> to vector<1x32xf32>
    %c24 = arith.constant 24 : index
    %c0_34 = arith.constant 0 : index
    %36 = vector.load %arg5[%c24, %c0_34] : memref<64x32xf32, #tpu.memory_space<vmem>>, vector<1x32xf32>
    tpu.vector_store %arg5[%c24, %c0_34], %35 {strides = array<i32>} : memref<64x32xf32, #tpu.memory_space<vmem>>, vector<1x32xf32>,
    %c1_35 = arith.constant 1 : index
    %c3_36 = arith.constant 3 : index
    %37 = memref.load %arg0[%c1_35, %c3_36] : memref<2x8xi32, #tpu.memory_space<smem>>
    %38 = arith.index_cast %37 : i32 to index
    %c0_37 = arith.constant 0 : index
    %c0_38 = arith.constant 0 : index
    %39 = vector.load %arg1[%38, %c0_37, %c0_38] : memref<50x1x32xf32, #tpu.memory_space<vmem>>, vector<1x1x32xf32>
    %40 = vector.shape_cast %39 : vector<1x1x32xf32> to vector<1x32xf32>
    %c25 = arith.constant 25 : index
    %c0_39 = arith.constant 0 : index
    %41 = vector.load %arg5[%c25, %c0_39] : memref<64x32xf32, #tpu.memory_space<vmem>>, vector<1x32xf32>
    tpu.vector_store %arg5[%c25, %c0_39], %40 {strides = array<i32>} : memref<64x32xf32, #tpu.memory_space<vmem>>, vector<1x32xf32>,
    %c0_40 = arith.constant 0 : index
    %c4 = arith.constant 4 : index
    %42 = memref.load %arg0[%c0_40, %c4] : memref<2x8xi32, #tpu.memory_space<smem>>
    %43 = arith.index_cast %42 : i32 to index
    %c0_41 = arith.constant 0 : index
    %c0_42 = arith.constant 0 : index
    %44 = vector.load %arg1[%43, %c0_41, %c0_42] : memref<50x1x32xf32, #tpu.memory_space<vmem>>, vector<1x1x32xf32>
    %45 = vector.shape_cast %44 : vector<1x1x32xf32> to vector<1x32xf32>
    %c32 = arith.constant 32 : index
    %c0_43 = arith.constant 0 : index
    %46 = vector.load %arg5[%c32, %c0_43] : memref<64x32xf32, #tpu.memory_space<vmem>>, vector<1x32xf32>
    tpu.vector_store %arg5[%c32, %c0_43], %45 {strides = array<i32>} : memref<64x32xf32, #tpu.memory_space<vmem>>, vector<1x32xf32>,
    %c1_44 = arith.constant 1 : index
    %c4_45 = arith.constant 4 : index
    %47 = memref.load %arg0[%c1_44, %c4_45] : memref<2x8xi32, #tpu.memory_space<smem>>
    %48 = arith.index_cast %47 : i32 to index
    %c0_46 = arith.constant 0 : index
    %c0_47 = arith.constant 0 : index
    %49 = vector.load %arg1[%48, %c0_46, %c0_47] : memref<50x1x32xf32, #tpu.memory_space<vmem>>, vector<1x1x32xf32>
    %50 = vector.shape_cast %49 : vector<1x1x32xf32> to vector<1x32xf32>
    %c33 = arith.constant 33 : index
    %c0_48 = arith.constant 0 : index
    %51 = vector.load %arg5[%c33, %c0_48] : memref<64x32xf32, #tpu.memory_space<vmem>>, vector<1x32xf32>
    tpu.vector_store %arg5[%c33, %c0_48], %50 {strides = array<i32>} : memref<64x32xf32, #tpu.memory_space<vmem>>, vector<1x32xf32>,
    %c0_49 = arith.constant 0 : index
    %c5 = arith.constant 5 : index
    %52 = memref.load %arg0[%c0_49, %c5] : memref<2x8xi32, #tpu.memory_space<smem>>
    %53 = arith.index_cast %52 : i32 to index
    %c0_50 = arith.constant 0 : index
    %c0_51 = arith.constant 0 : index
    %54 = vector.load %arg1[%53, %c0_50, %c0_51] : memref<50x1x32xf32, #tpu.memory_space<vmem>>, vector<1x1x32xf32>
    %55 = vector.shape_cast %54 : vector<1x1x32xf32> to vector<1x32xf32>
    %c40 = arith.constant 40 : index
    %c0_52 = arith.constant 0 : index
    %56 = vector.load %arg5[%c40, %c0_52] : memref<64x32xf32, #tpu.memory_space<vmem>>, vector<1x32xf32>
    tpu.vector_store %arg5[%c40, %c0_52], %55 {strides = array<i32>} : memref<64x32xf32, #tpu.memory_space<vmem>>, vector<1x32xf32>,
    %c1_53 = arith.constant 1 : index
    %c5_54 = arith.constant 5 : index
    %57 = memref.load %arg0[%c1_53, %c5_54] : memref<2x8xi32, #tpu.memory_space<smem>>
    %58 = arith.index_cast %57 : i32 to index
    %c0_55 = arith.constant 0 : index
    %c0_56 = arith.constant 0 : index
    %59 = vector.load %arg1[%58, %c0_55, %c0_56] : memref<50x1x32xf32, #tpu.memory_space<vmem>>, vector<1x1x32xf32>
    %60 = vector.shape_cast %59 : vector<1x1x32xf32> to vector<1x32xf32>
    %c41 = arith.constant 41 : index
    %c0_57 = arith.constant 0 : index
    %61 = vector.load %arg5[%c41, %c0_57] : memref<64x32xf32, #tpu.memory_space<vmem>>, vector<1x32xf32>
    tpu.vector_store %arg5[%c41, %c0_57], %60 {strides = array<i32>} : memref<64x32xf32, #tpu.memory_space<vmem>>, vector<1x32xf32>,
    %c0_58 = arith.constant 0 : index
    %c6 = arith.constant 6 : index
    %62 = memref.load %arg0[%c0_58, %c6] : memref<2x8xi32, #tpu.memory_space<smem>>
    %63 = arith.index_cast %62 : i32 to index
    %c0_59 = arith.constant 0 : index
    %c0_60 = arith.constant 0 : index
    %64 = vector.load %arg1[%63, %c0_59, %c0_60] : memref<50x1x32xf32, #tpu.memory_space<vmem>>, vector<1x1x32xf32>
    %65 = vector.shape_cast %64 : vector<1x1x32xf32> to vector<1x32xf32>
    %c48 = arith.constant 48 : index
    %c0_61 = arith.constant 0 : index
    %66 = vector.load %arg5[%c48, %c0_61] : memref<64x32xf32, #tpu.memory_space<vmem>>, vector<1x32xf32>
    tpu.vector_store %arg5[%c48, %c0_61], %65 {strides = array<i32>} : memref<64x32xf32, #tpu.memory_space<vmem>>, vector<1x32xf32>,
    %c1_62 = arith.constant 1 : index
    %c6_63 = arith.constant 6 : index
    %67 = memref.load %arg0[%c1_62, %c6_63] : memref<2x8xi32, #tpu.memory_space<smem>>
    %68 = arith.index_cast %67 : i32 to index
    %c0_64 = arith.constant 0 : index
    %c0_65 = arith.constant 0 : index
    %69 = vector.load %arg1[%68, %c0_64, %c0_65] : memref<50x1x32xf32, #tpu.memory_space<vmem>>, vector<1x1x32xf32>
    %70 = vector.shape_cast %69 : vector<1x1x32xf32> to vector<1x32xf32>
    %c49 = arith.constant 49 : index
    %c0_66 = arith.constant 0 : index
    %71 = vector.load %arg5[%c49, %c0_66] : memref<64x32xf32, #tpu.memory_space<vmem>>, vector<1x32xf32>
    tpu.vector_store %arg5[%c49, %c0_66], %70 {strides = array<i32>} : memref<64x32xf32, #tpu.memory_space<vmem>>, vector<1x32xf32>,
    %c0_67 = arith.constant 0 : index
    %c7 = arith.constant 7 : index
    %72 = memref.load %arg0[%c0_67, %c7] : memref<2x8xi32, #tpu.memory_space<smem>>
    %73 = arith.index_cast %72 : i32 to index
    %c0_68 = arith.constant 0 : index
    %c0_69 = arith.constant 0 : index
    %74 = vector.load %arg1[%73, %c0_68, %c0_69] : memref<50x1x32xf32, #tpu.memory_space<vmem>>, vector<1x1x32xf32>
    %75 = vector.shape_cast %74 : vector<1x1x32xf32> to vector<1x32xf32>
    %c56 = arith.constant 56 : index
    %c0_70 = arith.constant 0 : index
    %76 = vector.load %arg5[%c56, %c0_70] : memref<64x32xf32, #tpu.memory_space<vmem>>, vector<1x32xf32>
    tpu.vector_store %arg5[%c56, %c0_70], %75 {strides = array<i32>} : memref<64x32xf32, #tpu.memory_space<vmem>>, vector<1x32xf32>,
    %c1_71 = arith.constant 1 : index
    %c7_72 = arith.constant 7 : index
    %77 = memref.load %arg0[%c1_71, %c7_72] : memref<2x8xi32, #tpu.memory_space<smem>>
    %78 = arith.index_cast %77 : i32 to index
    %c0_73 = arith.constant 0 : index
    %c0_74 = arith.constant 0 : index
    %79 = vector.load %arg1[%78, %c0_73, %c0_74] : memref<50x1x32xf32, #tpu.memory_space<vmem>>, vector<1x1x32xf32>
    %80 = vector.shape_cast %79 : vector<1x1x32xf32> to vector<1x32xf32>
    %c57 = arith.constant 57 : index
    %c0_75 = arith.constant 0 : index
    %81 = vector.load %arg5[%c57, %c0_75] : memref<64x32xf32, #tpu.memory_space<vmem>>, vector<1x32xf32>
    tpu.vector_store %arg5[%c57, %c0_75], %80 {strides = array<i32>} : memref<64x32xf32, #tpu.memory_space<vmem>>, vector<1x32xf32>,
    %c0_76 = arith.constant 0 : index
    %c0_77 = arith.constant 0 : index
    %82 = vector.load %arg5[%c0_76, %c0_77] : memref<64x32xf32, #tpu.memory_space<vmem>>, vector<64x32xf32>
    %c0_78 = arith.constant 0 : index
    %c0_79 = arith.constant 0 : index
    %83 = vector.load %arg2[%c0_78, %c0_79] : memref<128x128xbf16, #tpu.memory_space<vmem>>, vector<32x128xbf16>
    %c32_80 = arith.constant 32 : index
    %c0_81 = arith.constant 0 : index
    %84 = vector.load %arg2[%c32_80, %c0_81] : memref<128x128xbf16, #tpu.memory_space<vmem>>, vector<32x128xbf16>
    %c0_82 = arith.constant 0 : index
    %c0_83 = arith.constant 0 : index
    %85 = vector.load %arg3[%c0_82, %c0_83] : memref<112x128xf32, #tpu.memory_space<vmem>>, vector<1x128xf32>
    %86 = arith.truncf %82 : vector<64x32xf32> to vector<64x32xbf16>
    %cst_84 = arith.constant dense<0.000000e+00> : vector<64x128xf32>
    %87 = tpu.matmul %86, %83, %cst_84 {dimension_numbers = #tpu.dot_dimension_numbers<[1], [0], [0], [1], [0, 0, 1, 1], [], []>} : vector<64x32xbf16>, vector<32x128xbf16>, vector<64x128xf32> -> vector<64x128xf32>
    %88 = vector.broadcast %85 : vector<1x128xf32> to vector<64x128xf32>
    %89 = arith.addf %87, %88 : vector<64x128xf32>
    %cst_85 = arith.constant 0.000000e+00 : f32
    %90 = vector.broadcast %cst_85 : f32 to vector<8x32xf32>
    %cst_86 = arith.constant 0.000000e+00 : f32
    %91 = vector.broadcast %cst_86 : f32 to vector<8x32xf32>
    %92 = vector.extract_strided_slice %89 {offsets = [0, 0], sizes = [8, 128], strides = [1, 1]} : vector<64x128xf32> to vector<8x128xf32>
    %93 = arith.truncf %90 : vector<8x32xf32> to vector<8x32xbf16>
    %cst_87 = arith.constant dense<0.000000e+00> : vector<8x128xf32>
    %94 = tpu.matmul %93, %84, %cst_87 {dimension_numbers = #tpu.dot_dimension_numbers<[1], [0], [0], [1], [0, 0, 1, 1], [], []>} : vector<8x32xbf16>, vector<32x128xbf16>, vector<8x128xf32> -> vector<8x128xf32>
    %95 = arith.addf %92, %94 : vector<8x128xf32>
    %96 = arith.negf %95 : vector<8x128xf32>
    %97 = math.exp %96 : vector<8x128xf32>
    %cst_88 = arith.constant 1.000000e+00 : f32
    %98 = vector.broadcast %cst_88 : f32 to vector<8x128xf32>
    %99 = arith.addf %98, %97 : vector<8x128xf32>
    %100 = arith.divf %98, %99 : vector<8x128xf32>
    %101 = math.tanh %95 : vector<8x128xf32>
    %102 = vector.extract_strided_slice %100 {offsets = [0, 0], sizes = [8, 32], strides = [1, 1]} : vector<8x128xf32> to vector<8x32xf32>
    %103 = vector.extract_strided_slice %100 {offsets = [0, 32], sizes = [8, 32], strides = [1, 1]} : vector<8x128xf32> to vector<8x32xf32>
    %104 = vector.extract_strided_slice %101 {offsets = [0, 64], sizes = [8, 32], strides = [1, 1]} : vector<8x128xf32> to vector<8x32xf32>
    %105 = vector.extract_strided_slice %100 {offsets = [0, 96], sizes = [8, 32], strides = [1, 1]} : vector<8x128xf32> to vector<8x32xf32>
    %106 = arith.mulf %103, %91 : vector<8x32xf32>
    %107 = arith.mulf %102, %104 : vector<8x32xf32>
    %108 = arith.addf %106, %107 : vector<8x32xf32>
    %109 = math.tanh %108 : vector<8x32xf32>
    %110 = arith.mulf %105, %109 : vector<8x32xf32>
    %c0_89 = arith.constant 0 : index
    %c0_90 = arith.constant 0 : index
    %111 = vector.load %arg6[%c0_89, %c0_90] : memref<64x32xf32, #tpu.memory_space<vmem>>, vector<8x32xf32>
    tpu.vector_store %arg6[%c0_89, %c0_90], %110 {strides = array<i32>} : memref<64x32xf32, #tpu.memory_space<vmem>>, vector<8x32xf32>,
    %112 = vector.extract_strided_slice %89 {offsets = [8, 0], sizes = [8, 128], strides = [1, 1]} : vector<64x128xf32> to vector<8x128xf32>
    %113 = arith.truncf %110 : vector<8x32xf32> to vector<8x32xbf16>
    %cst_91 = arith.constant dense<0.000000e+00> : vector<8x128xf32>
    %114 = tpu.matmul %113, %84, %cst_91 {dimension_numbers = #tpu.dot_dimension_numbers<[1], [0], [0], [1], [0, 0, 1, 1], [], []>} : vector<8x32xbf16>, vector<32x128xbf16>, vector<8x128xf32> -> vector<8x128xf32>
    %115 = arith.addf %112, %114 : vector<8x128xf32>
    %116 = arith.negf %115 : vector<8x128xf32>
    %117 = math.exp %116 : vector<8x128xf32>
    %cst_92 = arith.constant 1.000000e+00 : f32
    %118 = vector.broadcast %cst_92 : f32 to vector<8x128xf32>
    %119 = arith.addf %118, %117 : vector<8x128xf32>
    %120 = arith.divf %118, %119 : vector<8x128xf32>
    %121 = math.tanh %115 : vector<8x128xf32>
    %122 = vector.extract_strided_slice %120 {offsets = [0, 0], sizes = [8, 32], strides = [1, 1]} : vector<8x128xf32> to vector<8x32xf32>
    %123 = vector.extract_strided_slice %120 {offsets = [0, 32], sizes = [8, 32], strides = [1, 1]} : vector<8x128xf32> to vector<8x32xf32>
    %124 = vector.extract_strided_slice %121 {offsets = [0, 64], sizes = [8, 32], strides = [1, 1]} : vector<8x128xf32> to vector<8x32xf32>
    %125 = vector.extract_strided_slice %120 {offsets = [0, 96], sizes = [8, 32], strides = [1, 1]} : vector<8x128xf32> to vector<8x32xf32>
    %126 = arith.mulf %123, %108 : vector<8x32xf32>
    %127 = arith.mulf %122, %124 : vector<8x32xf32>
    %128 = arith.addf %126, %127 : vector<8x32xf32>
    %129 = math.tanh %128 : vector<8x32xf32>
    %130 = arith.mulf %125, %129 : vector<8x32xf32>
    %c8_93 = arith.constant 8 : index
    %c0_94 = arith.constant 0 : index
    %131 = vector.load %arg6[%c8_93, %c0_94] : memref<64x32xf32, #tpu.memory_space<vmem>>, vector<8x32xf32>
    tpu.vector_store %arg6[%c8_93, %c0_94], %130 {strides = array<i32>} : memref<64x32xf32, #tpu.memory_space<vmem>>, vector<8x32xf32>,
    %132 = vector.extract_strided_slice %89 {offsets = [16, 0], sizes = [8, 128], strides = [1, 1]} : vector<64x128xf32> to vector<8x128xf32>
    %133 = arith.truncf %130 : vector<8x32xf32> to vector<8x32xbf16>
    %cst_95 = arith.constant dense<0.000000e+00> : vector<8x128xf32>
    %134 = tpu.matmul %133, %84, %cst_95 {dimension_numbers = #tpu.dot_dimension_numbers<[1], [0], [0], [1], [0, 0, 1, 1], [], []>} : vector<8x32xbf16>, vector<32x128xbf16>, vector<8x128xf32> -> vector<8x128xf32>
    %135 = arith.addf %132, %134 : vector<8x128xf32>
    %136 = arith.negf %135 : vector<8x128xf32>
    %137 = math.exp %136 : vector<8x128xf32>
    %cst_96 = arith.constant 1.000000e+00 : f32
    %138 = vector.broadcast %cst_96 : f32 to vector<8x128xf32>
    %139 = arith.addf %138, %137 : vector<8x128xf32>
    %140 = arith.divf %138, %139 : vector<8x128xf32>
    %141 = math.tanh %135 : vector<8x128xf32>
    %142 = vector.extract_strided_slice %140 {offsets = [0, 0], sizes = [8, 32], strides = [1, 1]} : vector<8x128xf32> to vector<8x32xf32>
    %143 = vector.extract_strided_slice %140 {offsets = [0, 32], sizes = [8, 32], strides = [1, 1]} : vector<8x128xf32> to vector<8x32xf32>
    %144 = vector.extract_strided_slice %141 {offsets = [0, 64], sizes = [8, 32], strides = [1, 1]} : vector<8x128xf32> to vector<8x32xf32>
    %145 = vector.extract_strided_slice %140 {offsets = [0, 96], sizes = [8, 32], strides = [1, 1]} : vector<8x128xf32> to vector<8x32xf32>
    %146 = arith.mulf %143, %128 : vector<8x32xf32>
    %147 = arith.mulf %142, %144 : vector<8x32xf32>
    %148 = arith.addf %146, %147 : vector<8x32xf32>
    %149 = math.tanh %148 : vector<8x32xf32>
    %150 = arith.mulf %145, %149 : vector<8x32xf32>
    %c16_97 = arith.constant 16 : index
    %c0_98 = arith.constant 0 : index
    %151 = vector.load %arg6[%c16_97, %c0_98] : memref<64x32xf32, #tpu.memory_space<vmem>>, vector<8x32xf32>
    tpu.vector_store %arg6[%c16_97, %c0_98], %150 {strides = array<i32>} : memref<64x32xf32, #tpu.memory_space<vmem>>, vector<8x32xf32>,
    %152 = vector.extract_strided_slice %89 {offsets = [24, 0], sizes = [8, 128], strides = [1, 1]} : vector<64x128xf32> to vector<8x128xf32>
    %153 = arith.truncf %150 : vector<8x32xf32> to vector<8x32xbf16>
    %cst_99 = arith.constant dense<0.000000e+00> : vector<8x128xf32>
    %154 = tpu.matmul %153, %84, %cst_99 {dimension_numbers = #tpu.dot_dimension_numbers<[1], [0], [0], [1], [0, 0, 1, 1], [], []>} : vector<8x32xbf16>, vector<32x128xbf16>, vector<8x128xf32> -> vector<8x128xf32>
    %155 = arith.addf %152, %154 : vector<8x128xf32>
    %156 = arith.negf %155 : vector<8x128xf32>
    %157 = math.exp %156 : vector<8x128xf32>
    %cst_100 = arith.constant 1.000000e+00 : f32
    %158 = vector.broadcast %cst_100 : f32 to vector<8x128xf32>
    %159 = arith.addf %158, %157 : vector<8x128xf32>
    %160 = arith.divf %158, %159 : vector<8x128xf32>
    %161 = math.tanh %155 : vector<8x128xf32>
    %162 = vector.extract_strided_slice %160 {offsets = [0, 0], sizes = [8, 32], strides = [1, 1]} : vector<8x128xf32> to vector<8x32xf32>
    %163 = vector.extract_strided_slice %160 {offsets = [0, 32], sizes = [8, 32], strides = [1, 1]} : vector<8x128xf32> to vector<8x32xf32>
    %164 = vector.extract_strided_slice %161 {offsets = [0, 64], sizes = [8, 32], strides = [1, 1]} : vector<8x128xf32> to vector<8x32xf32>
    %165 = vector.extract_strided_slice %160 {offsets = [0, 96], sizes = [8, 32], strides = [1, 1]} : vector<8x128xf32> to vector<8x32xf32>
    %166 = arith.mulf %163, %148 : vector<8x32xf32>
    %167 = arith.mulf %162, %164 : vector<8x32xf32>
    %168 = arith.addf %166, %167 : vector<8x32xf32>
    %169 = math.tanh %168 : vector<8x32xf32>
    %170 = arith.mulf %165, %169 : vector<8x32xf32>
    %c24_101 = arith.constant 24 : index
    %c0_102 = arith.constant 0 : index
    %171 = vector.load %arg6[%c24_101, %c0_102] : memref<64x32xf32, #tpu.memory_space<vmem>>, vector<8x32xf32>
    tpu.vector_store %arg6[%c24_101, %c0_102], %170 {strides = array<i32>} : memref<64x32xf32, #tpu.memory_space<vmem>>, vector<8x32xf32>,
    %172 = vector.extract_strided_slice %89 {offsets = [32, 0], sizes = [8, 128], strides = [1, 1]} : vector<64x128xf32> to vector<8x128xf32>
    %173 = arith.truncf %170 : vector<8x32xf32> to vector<8x32xbf16>
    %cst_103 = arith.constant dense<0.000000e+00> : vector<8x128xf32>
    %174 = tpu.matmul %173, %84, %cst_103 {dimension_numbers = #tpu.dot_dimension_numbers<[1], [0], [0], [1], [0, 0, 1, 1], [], []>} : vector<8x32xbf16>, vector<32x128xbf16>, vector<8x128xf32> -> vector<8x128xf32>
    %175 = arith.addf %172, %174 : vector<8x128xf32>
    %176 = arith.negf %175 : vector<8x128xf32>
    %177 = math.exp %176 : vector<8x128xf32>
    %cst_104 = arith.constant 1.000000e+00 : f32
    %178 = vector.broadcast %cst_104 : f32 to vector<8x128xf32>
    %179 = arith.addf %178, %177 : vector<8x128xf32>
    %180 = arith.divf %178, %179 : vector<8x128xf32>
    %181 = math.tanh %175 : vector<8x128xf32>
    %182 = vector.extract_strided_slice %180 {offsets = [0, 0], sizes = [8, 32], strides = [1, 1]} : vector<8x128xf32> to vector<8x32xf32>
    %183 = vector.extract_strided_slice %180 {offsets = [0, 32], sizes = [8, 32], strides = [1, 1]} : vector<8x128xf32> to vector<8x32xf32>
    %184 = vector.extract_strided_slice %181 {offsets = [0, 64], sizes = [8, 32], strides = [1, 1]} : vector<8x128xf32> to vector<8x32xf32>
    %185 = vector.extract_strided_slice %180 {offsets = [0, 96], sizes = [8, 32], strides = [1, 1]} : vector<8x128xf32> to vector<8x32xf32>
    %186 = arith.mulf %183, %168 : vector<8x32xf32>
    %187 = arith.mulf %182, %184 : vector<8x32xf32>
    %188 = arith.addf %186, %187 : vector<8x32xf32>
    %189 = math.tanh %188 : vector<8x32xf32>
    %190 = arith.mulf %185, %189 : vector<8x32xf32>
    %c32_105 = arith.constant 32 : index
    %c0_106 = arith.constant 0 : index
    %191 = vector.load %arg6[%c32_105, %c0_106] : memref<64x32xf32, #tpu.memory_space<vmem>>, vector<8x32xf32>
    tpu.vector_store %arg6[%c32_105, %c0_106], %190 {strides = array<i32>} : memref<64x32xf32, #tpu.memory_space<vmem>>, vector<8x32xf32>,
    %192 = vector.extract_strided_slice %89 {offsets = [40, 0], sizes = [8, 128], strides = [1, 1]} : vector<64x128xf32> to vector<8x128xf32>
    %193 = arith.truncf %190 : vector<8x32xf32> to vector<8x32xbf16>
    %cst_107 = arith.constant dense<0.000000e+00> : vector<8x128xf32>
    %194 = tpu.matmul %193, %84, %cst_107 {dimension_numbers = #tpu.dot_dimension_numbers<[1], [0], [0], [1], [0, 0, 1, 1], [], []>} : vector<8x32xbf16>, vector<32x128xbf16>, vector<8x128xf32> -> vector<8x128xf32>
    %195 = arith.addf %192, %194 : vector<8x128xf32>
    %196 = arith.negf %195 : vector<8x128xf32>
    %197 = math.exp %196 : vector<8x128xf32>
    %cst_108 = arith.constant 1.000000e+00 : f32
    %198 = vector.broadcast %cst_108 : f32 to vector<8x128xf32>
    %199 = arith.addf %198, %197 : vector<8x128xf32>
    %200 = arith.divf %198, %199 : vector<8x128xf32>
    %201 = math.tanh %195 : vector<8x128xf32>
    %202 = vector.extract_strided_slice %200 {offsets = [0, 0], sizes = [8, 32], strides = [1, 1]} : vector<8x128xf32> to vector<8x32xf32>
    %203 = vector.extract_strided_slice %200 {offsets = [0, 32], sizes = [8, 32], strides = [1, 1]} : vector<8x128xf32> to vector<8x32xf32>
    %204 = vector.extract_strided_slice %201 {offsets = [0, 64], sizes = [8, 32], strides = [1, 1]} : vector<8x128xf32> to vector<8x32xf32>
    %205 = vector.extract_strided_slice %200 {offsets = [0, 96], sizes = [8, 32], strides = [1, 1]} : vector<8x128xf32> to vector<8x32xf32>
    %206 = arith.mulf %203, %188 : vector<8x32xf32>
    %207 = arith.mulf %202, %204 : vector<8x32xf32>
    %208 = arith.addf %206, %207 : vector<8x32xf32>
    %209 = math.tanh %208 : vector<8x32xf32>
    %210 = arith.mulf %205, %209 : vector<8x32xf32>
    %c40_109 = arith.constant 40 : index
    %c0_110 = arith.constant 0 : index
    %211 = vector.load %arg6[%c40_109, %c0_110] : memref<64x32xf32, #tpu.memory_space<vmem>>, vector<8x32xf32>
    tpu.vector_store %arg6[%c40_109, %c0_110], %210 {strides = array<i32>} : memref<64x32xf32, #tpu.memory_space<vmem>>, vector<8x32xf32>,
    %212 = vector.extract_strided_slice %89 {offsets = [48, 0], sizes = [8, 128], strides = [1, 1]} : vector<64x128xf32> to vector<8x128xf32>
    %213 = arith.truncf %210 : vector<8x32xf32> to vector<8x32xbf16>
    %cst_111 = arith.constant dense<0.000000e+00> : vector<8x128xf32>
    %214 = tpu.matmul %213, %84, %cst_111 {dimension_numbers = #tpu.dot_dimension_numbers<[1], [0], [0], [1], [0, 0, 1, 1], [], []>} : vector<8x32xbf16>, vector<32x128xbf16>, vector<8x128xf32> -> vector<8x128xf32>
    %215 = arith.addf %212, %214 : vector<8x128xf32>
    %216 = arith.negf %215 : vector<8x128xf32>
    %217 = math.exp %216 : vector<8x128xf32>
    %cst_112 = arith.constant 1.000000e+00 : f32
    %218 = vector.broadcast %cst_112 : f32 to vector<8x128xf32>
    %219 = arith.addf %218, %217 : vector<8x128xf32>
    %220 = arith.divf %218, %219 : vector<8x128xf32>
    %221 = math.tanh %215 : vector<8x128xf32>
    %222 = vector.extract_strided_slice %220 {offsets = [0, 0], sizes = [8, 32], strides = [1, 1]} : vector<8x128xf32> to vector<8x32xf32>
    %223 = vector.extract_strided_slice %220 {offsets = [0, 32], sizes = [8, 32], strides = [1, 1]} : vector<8x128xf32> to vector<8x32xf32>
    %224 = vector.extract_strided_slice %221 {offsets = [0, 64], sizes = [8, 32], strides = [1, 1]} : vector<8x128xf32> to vector<8x32xf32>
    %225 = vector.extract_strided_slice %220 {offsets = [0, 96], sizes = [8, 32], strides = [1, 1]} : vector<8x128xf32> to vector<8x32xf32>
    %226 = arith.mulf %223, %208 : vector<8x32xf32>
    %227 = arith.mulf %222, %224 : vector<8x32xf32>
    %228 = arith.addf %226, %227 : vector<8x32xf32>
    %229 = math.tanh %228 : vector<8x32xf32>
    %230 = arith.mulf %225, %229 : vector<8x32xf32>
    %c48_113 = arith.constant 48 : index
    %c0_114 = arith.constant 0 : index
    %231 = vector.load %arg6[%c48_113, %c0_114] : memref<64x32xf32, #tpu.memory_space<vmem>>, vector<8x32xf32>
    tpu.vector_store %arg6[%c48_113, %c0_114], %230 {strides = array<i32>} : memref<64x32xf32, #tpu.memory_space<vmem>>, vector<8x32xf32>,
    %232 = vector.extract_strided_slice %89 {offsets = [56, 0], sizes = [8, 128], strides = [1, 1]} : vector<64x128xf32> to vector<8x128xf32>
    %233 = arith.truncf %230 : vector<8x32xf32> to vector<8x32xbf16>
    %cst_115 = arith.constant dense<0.000000e+00> : vector<8x128xf32>
    %234 = tpu.matmul %233, %84, %cst_115 {dimension_numbers = #tpu.dot_dimension_numbers<[1], [0], [0], [1], [0, 0, 1, 1], [], []>} : vector<8x32xbf16>, vector<32x128xbf16>, vector<8x128xf32> -> vector<8x128xf32>
    %235 = arith.addf %232, %234 : vector<8x128xf32>
    %236 = arith.negf %235 : vector<8x128xf32>
    %237 = math.exp %236 : vector<8x128xf32>
    %cst_116 = arith.constant 1.000000e+00 : f32
    %238 = vector.broadcast %cst_116 : f32 to vector<8x128xf32>
    %239 = arith.addf %238, %237 : vector<8x128xf32>
    %240 = arith.divf %238, %239 : vector<8x128xf32>
    %241 = math.tanh %235 : vector<8x128xf32>
    %242 = vector.extract_strided_slice %240 {offsets = [0, 0], sizes = [8, 32], strides = [1, 1]} : vector<8x128xf32> to vector<8x32xf32>
    %243 = vector.extract_strided_slice %240 {offsets = [0, 32], sizes = [8, 32], strides = [1, 1]} : vector<8x128xf32> to vector<8x32xf32>
    %244 = vector.extract_strided_slice %241 {offsets = [0, 64], sizes = [8, 32], strides = [1, 1]} : vector<8x128xf32> to vector<8x32xf32>
    %245 = vector.extract_strided_slice %240 {offsets = [0, 96], sizes = [8, 32], strides = [1, 1]} : vector<8x128xf32> to vector<8x32xf32>
    %246 = arith.mulf %243, %228 : vector<8x32xf32>
    %247 = arith.mulf %242, %244 : vector<8x32xf32>
    %248 = arith.addf %246, %247 : vector<8x32xf32>
    %249 = math.tanh %248 : vector<8x32xf32>
    %250 = arith.mulf %245, %249 : vector<8x32xf32>
    %c56_117 = arith.constant 56 : index
    %c0_118 = arith.constant 0 : index
    %251 = vector.load %arg6[%c56_117, %c0_118] : memref<64x32xf32, #tpu.memory_space<vmem>>, vector<8x32xf32>
    tpu.vector_store %arg6[%c56_117, %c0_118], %250 {strides = array<i32>} : memref<64x32xf32, #tpu.memory_space<vmem>>, vector<8x32xf32>,
    %c0_119 = arith.constant 0 : index
    %c0_120 = arith.constant 0 : index
    %252 = vector.load %arg6[%c0_119, %c0_120] : memref<64x32xf32, #tpu.memory_space<vmem>>, vector<64x32xf32>
    %c64 = arith.constant 64 : index
    %c0_121 = arith.constant 0 : index
    %253 = vector.load %arg2[%c64, %c0_121] : memref<128x128xbf16, #tpu.memory_space<vmem>>, vector<32x128xbf16>
    %c96 = arith.constant 96 : index
    %c0_122 = arith.constant 0 : index
    %254 = vector.load %arg2[%c96, %c0_122] : memref<128x128xbf16, #tpu.memory_space<vmem>>, vector<32x128xbf16>
    %c8_123 = arith.constant 8 : index
    %c0_124 = arith.constant 0 : index
    %255 = vector.load %arg3[%c8_123, %c0_124] : memref<112x128xf32, #tpu.memory_space<vmem>>, vector<1x128xf32>
    %256 = arith.truncf %252 : vector<64x32xf32> to vector<64x32xbf16>
    %cst_125 = arith.constant dense<0.000000e+00> : vector<64x128xf32>
    %257 = tpu.matmul %256, %253, %cst_125 {dimension_numbers = #tpu.dot_dimension_numbers<[1], [0], [0], [1], [0, 0, 1, 1], [], []>} : vector<64x32xbf16>, vector<32x128xbf16>, vector<64x128xf32> -> vector<64x128xf32>
    %258 = vector.broadcast %255 : vector<1x128xf32> to vector<64x128xf32>
    %259 = arith.addf %257, %258 : vector<64x128xf32>
    %cst_126 = arith.constant 0.000000e+00 : f32
    %260 = vector.broadcast %cst_126 : f32 to vector<8x32xf32>
    %cst_127 = arith.constant 0.000000e+00 : f32
    %261 = vector.broadcast %cst_127 : f32 to vector<8x32xf32>
    %262 = vector.extract_strided_slice %259 {offsets = [0, 0], sizes = [8, 128], strides = [1, 1]} : vector<64x128xf32> to vector<8x128xf32>
    %263 = arith.truncf %260 : vector<8x32xf32> to vector<8x32xbf16>
    %cst_128 = arith.constant dense<0.000000e+00> : vector<8x128xf32>
    %264 = tpu.matmul %263, %254, %cst_128 {dimension_numbers = #tpu.dot_dimension_numbers<[1], [0], [0], [1], [0, 0, 1, 1], [], []>} : vector<8x32xbf16>, vector<32x128xbf16>, vector<8x128xf32> -> vector<8x128xf32>
    %265 = arith.addf %262, %264 : vector<8x128xf32>
    %266 = arith.negf %265 : vector<8x128xf32>
    %267 = math.exp %266 : vector<8x128xf32>
    %cst_129 = arith.constant 1.000000e+00 : f32
    %268 = vector.broadcast %cst_129 : f32 to vector<8x128xf32>
    %269 = arith.addf %268, %267 : vector<8x128xf32>
    %270 = arith.divf %268, %269 : vector<8x128xf32>
    %271 = math.tanh %265 : vector<8x128xf32>
    %272 = vector.extract_strided_slice %270 {offsets = [0, 0], sizes = [8, 32], strides = [1, 1]} : vector<8x128xf32> to vector<8x32xf32>
    %273 = vector.extract_strided_slice %270 {offsets = [0, 32], sizes = [8, 32], strides = [1, 1]} : vector<8x128xf32> to vector<8x32xf32>
    %274 = vector.extract_strided_slice %271 {offsets = [0, 64], sizes = [8, 32], strides = [1, 1]} : vector<8x128xf32> to vector<8x32xf32>
    %275 = vector.extract_strided_slice %270 {offsets = [0, 96], sizes = [8, 32], strides = [1, 1]} : vector<8x128xf32> to vector<8x32xf32>
    %276 = arith.mulf %273, %261 : vector<8x32xf32>
    %277 = arith.mulf %272, %274 : vector<8x32xf32>
    %278 = arith.addf %276, %277 : vector<8x32xf32>
    %279 = math.tanh %278 : vector<8x32xf32>
    %280 = arith.mulf %275, %279 : vector<8x32xf32>
    %c0_130 = arith.constant 0 : index
    %c0_131 = arith.constant 0 : index
    %281 = vector.load %arg6[%c0_130, %c0_131] : memref<64x32xf32, #tpu.memory_space<vmem>>, vector<8x32xf32>
    tpu.vector_store %arg6[%c0_130, %c0_131], %280 {strides = array<i32>} : memref<64x32xf32, #tpu.memory_space<vmem>>, vector<8x32xf32>,
    %282 = vector.extract_strided_slice %259 {offsets = [8, 0], sizes = [8, 128], strides = [1, 1]} : vector<64x128xf32> to vector<8x128xf32>
    %283 = arith.truncf %280 : vector<8x32xf32> to vector<8x32xbf16>
    %cst_132 = arith.constant dense<0.000000e+00> : vector<8x128xf32>
    %284 = tpu.matmul %283, %254, %cst_132 {dimension_numbers = #tpu.dot_dimension_numbers<[1], [0], [0], [1], [0, 0, 1, 1], [], []>} : vector<8x32xbf16>, vector<32x128xbf16>, vector<8x128xf32> -> vector<8x128xf32>
    %285 = arith.addf %282, %284 : vector<8x128xf32>
    %286 = arith.negf %285 : vector<8x128xf32>
    %287 = math.exp %286 : vector<8x128xf32>
    %cst_133 = arith.constant 1.000000e+00 : f32
    %288 = vector.broadcast %cst_133 : f32 to vector<8x128xf32>
    %289 = arith.addf %288, %287 : vector<8x128xf32>
    %290 = arith.divf %288, %289 : vector<8x128xf32>
    %291 = math.tanh %285 : vector<8x128xf32>
    %292 = vector.extract_strided_slice %290 {offsets = [0, 0], sizes = [8, 32], strides = [1, 1]} : vector<8x128xf32> to vector<8x32xf32>
    %293 = vector.extract_strided_slice %290 {offsets = [0, 32], sizes = [8, 32], strides = [1, 1]} : vector<8x128xf32> to vector<8x32xf32>
    %294 = vector.extract_strided_slice %291 {offsets = [0, 64], sizes = [8, 32], strides = [1, 1]} : vector<8x128xf32> to vector<8x32xf32>
    %295 = vector.extract_strided_slice %290 {offsets = [0, 96], sizes = [8, 32], strides = [1, 1]} : vector<8x128xf32> to vector<8x32xf32>
    %296 = arith.mulf %293, %278 : vector<8x32xf32>
    %297 = arith.mulf %292, %294 : vector<8x32xf32>
    %298 = arith.addf %296, %297 : vector<8x32xf32>
    %299 = math.tanh %298 : vector<8x32xf32>
    %300 = arith.mulf %295, %299 : vector<8x32xf32>
    %c8_134 = arith.constant 8 : index
    %c0_135 = arith.constant 0 : index
    %301 = vector.load %arg6[%c8_134, %c0_135] : memref<64x32xf32, #tpu.memory_space<vmem>>, vector<8x32xf32>
    tpu.vector_store %arg6[%c8_134, %c0_135], %300 {strides = array<i32>} : memref<64x32xf32, #tpu.memory_space<vmem>>, vector<8x32xf32>,
    %302 = vector.extract_strided_slice %259 {offsets = [16, 0], sizes = [8, 128], strides = [1, 1]} : vector<64x128xf32> to vector<8x128xf32>
    %303 = arith.truncf %300 : vector<8x32xf32> to vector<8x32xbf16>
    %cst_136 = arith.constant dense<0.000000e+00> : vector<8x128xf32>
    %304 = tpu.matmul %303, %254, %cst_136 {dimension_numbers = #tpu.dot_dimension_numbers<[1], [0], [0], [1], [0, 0, 1, 1], [], []>} : vector<8x32xbf16>, vector<32x128xbf16>, vector<8x128xf32> -> vector<8x128xf32>
    %305 = arith.addf %302, %304 : vector<8x128xf32>
    %306 = arith.negf %305 : vector<8x128xf32>
    %307 = math.exp %306 : vector<8x128xf32>
    %cst_137 = arith.constant 1.000000e+00 : f32
    %308 = vector.broadcast %cst_137 : f32 to vector<8x128xf32>
    %309 = arith.addf %308, %307 : vector<8x128xf32>
    %310 = arith.divf %308, %309 : vector<8x128xf32>
    %311 = math.tanh %305 : vector<8x128xf32>
    %312 = vector.extract_strided_slice %310 {offsets = [0, 0], sizes = [8, 32], strides = [1, 1]} : vector<8x128xf32> to vector<8x32xf32>
    %313 = vector.extract_strided_slice %310 {offsets = [0, 32], sizes = [8, 32], strides = [1, 1]} : vector<8x128xf32> to vector<8x32xf32>
    %314 = vector.extract_strided_slice %311 {offsets = [0, 64], sizes = [8, 32], strides = [1, 1]} : vector<8x128xf32> to vector<8x32xf32>
    %315 = vector.extract_strided_slice %310 {offsets = [0, 96], sizes = [8, 32], strides = [1, 1]} : vector<8x128xf32> to vector<8x32xf32>
    %316 = arith.mulf %313, %298 : vector<8x32xf32>
    %317 = arith.mulf %312, %314 : vector<8x32xf32>
    %318 = arith.addf %316, %317 : vector<8x32xf32>
    %319 = math.tanh %318 : vector<8x32xf32>
    %320 = arith.mulf %315, %319 : vector<8x32xf32>
    %c16_138 = arith.constant 16 : index
    %c0_139 = arith.constant 0 : index
    %321 = vector.load %arg6[%c16_138, %c0_139] : memref<64x32xf32, #tpu.memory_space<vmem>>, vector<8x32xf32>
    tpu.vector_store %arg6[%c16_138, %c0_139], %320 {strides = array<i32>} : memref<64x32xf32, #tpu.memory_space<vmem>>, vector<8x32xf32>,
    %322 = vector.extract_strided_slice %259 {offsets = [24, 0], sizes = [8, 128], strides = [1, 1]} : vector<64x128xf32> to vector<8x128xf32>
    %323 = arith.truncf %320 : vector<8x32xf32> to vector<8x32xbf16>
    %cst_140 = arith.constant dense<0.000000e+00> : vector<8x128xf32>
    %324 = tpu.matmul %323, %254, %cst_140 {dimension_numbers = #tpu.dot_dimension_numbers<[1], [0], [0], [1], [0, 0, 1, 1], [], []>} : vector<8x32xbf16>, vector<32x128xbf16>, vector<8x128xf32> -> vector<8x128xf32>
    %325 = arith.addf %322, %324 : vector<8x128xf32>
    %326 = arith.negf %325 : vector<8x128xf32>
    %327 = math.exp %326 : vector<8x128xf32>
    %cst_141 = arith.constant 1.000000e+00 : f32
    %328 = vector.broadcast %cst_141 : f32 to vector<8x128xf32>
    %329 = arith.addf %328, %327 : vector<8x128xf32>
    %330 = arith.divf %328, %329 : vector<8x128xf32>
    %331 = math.tanh %325 : vector<8x128xf32>
    %332 = vector.extract_strided_slice %330 {offsets = [0, 0], sizes = [8, 32], strides = [1, 1]} : vector<8x128xf32> to vector<8x32xf32>
    %333 = vector.extract_strided_slice %330 {offsets = [0, 32], sizes = [8, 32], strides = [1, 1]} : vector<8x128xf32> to vector<8x32xf32>
    %334 = vector.extract_strided_slice %331 {offsets = [0, 64], sizes = [8, 32], strides = [1, 1]} : vector<8x128xf32> to vector<8x32xf32>
    %335 = vector.extract_strided_slice %330 {offsets = [0, 96], sizes = [8, 32], strides = [1, 1]} : vector<8x128xf32> to vector<8x32xf32>
    %336 = arith.mulf %333, %318 : vector<8x32xf32>
    %337 = arith.mulf %332, %334 : vector<8x32xf32>
    %338 = arith.addf %336, %337 : vector<8x32xf32>
    %339 = math.tanh %338 : vector<8x32xf32>
    %340 = arith.mulf %335, %339 : vector<8x32xf32>
    %c24_142 = arith.constant 24 : index
    %c0_143 = arith.constant 0 : index
    %341 = vector.load %arg6[%c24_142, %c0_143] : memref<64x32xf32, #tpu.memory_space<vmem>>, vector<8x32xf32>
    tpu.vector_store %arg6[%c24_142, %c0_143], %340 {strides = array<i32>} : memref<64x32xf32, #tpu.memory_space<vmem>>, vector<8x32xf32>,
    %342 = vector.extract_strided_slice %259 {offsets = [32, 0], sizes = [8, 128], strides = [1, 1]} : vector<64x128xf32> to vector<8x128xf32>
    %343 = arith.truncf %340 : vector<8x32xf32> to vector<8x32xbf16>
    %cst_144 = arith.constant dense<0.000000e+00> : vector<8x128xf32>
    %344 = tpu.matmul %343, %254, %cst_144 {dimension_numbers = #tpu.dot_dimension_numbers<[1], [0], [0], [1], [0, 0, 1, 1], [], []>} : vector<8x32xbf16>, vector<32x128xbf16>, vector<8x128xf32> -> vector<8x128xf32>
    %345 = arith.addf %342, %344 : vector<8x128xf32>
    %346 = arith.negf %345 : vector<8x128xf32>
    %347 = math.exp %346 : vector<8x128xf32>
    %cst_145 = arith.constant 1.000000e+00 : f32
    %348 = vector.broadcast %cst_145 : f32 to vector<8x128xf32>
    %349 = arith.addf %348, %347 : vector<8x128xf32>
    %350 = arith.divf %348, %349 : vector<8x128xf32>
    %351 = math.tanh %345 : vector<8x128xf32>
    %352 = vector.extract_strided_slice %350 {offsets = [0, 0], sizes = [8, 32], strides = [1, 1]} : vector<8x128xf32> to vector<8x32xf32>
    %353 = vector.extract_strided_slice %350 {offsets = [0, 32], sizes = [8, 32], strides = [1, 1]} : vector<8x128xf32> to vector<8x32xf32>
    %354 = vector.extract_strided_slice %351 {offsets = [0, 64], sizes = [8, 32], strides = [1, 1]} : vector<8x128xf32> to vector<8x32xf32>
    %355 = vector.extract_strided_slice %350 {offsets = [0, 96], sizes = [8, 32], strides = [1, 1]} : vector<8x128xf32> to vector<8x32xf32>
    %356 = arith.mulf %353, %338 : vector<8x32xf32>
    %357 = arith.mulf %352, %354 : vector<8x32xf32>
    %358 = arith.addf %356, %357 : vector<8x32xf32>
    %359 = math.tanh %358 : vector<8x32xf32>
    %360 = arith.mulf %355, %359 : vector<8x32xf32>
    %c32_146 = arith.constant 32 : index
    %c0_147 = arith.constant 0 : index
    %361 = vector.load %arg6[%c32_146, %c0_147] : memref<64x32xf32, #tpu.memory_space<vmem>>, vector<8x32xf32>
    tpu.vector_store %arg6[%c32_146, %c0_147], %360 {strides = array<i32>} : memref<64x32xf32, #tpu.memory_space<vmem>>, vector<8x32xf32>,
    %362 = vector.extract_strided_slice %259 {offsets = [40, 0], sizes = [8, 128], strides = [1, 1]} : vector<64x128xf32> to vector<8x128xf32>
    %363 = arith.truncf %360 : vector<8x32xf32> to vector<8x32xbf16>
    %cst_148 = arith.constant dense<0.000000e+00> : vector<8x128xf32>
    %364 = tpu.matmul %363, %254, %cst_148 {dimension_numbers = #tpu.dot_dimension_numbers<[1], [0], [0], [1], [0, 0, 1, 1], [], []>} : vector<8x32xbf16>, vector<32x128xbf16>, vector<8x128xf32> -> vector<8x128xf32>
    %365 = arith.addf %362, %364 : vector<8x128xf32>
    %366 = arith.negf %365 : vector<8x128xf32>
    %367 = math.exp %366 : vector<8x128xf32>
    %cst_149 = arith.constant 1.000000e+00 : f32
    %368 = vector.broadcast %cst_149 : f32 to vector<8x128xf32>
    %369 = arith.addf %368, %367 : vector<8x128xf32>
    %370 = arith.divf %368, %369 : vector<8x128xf32>
    %371 = math.tanh %365 : vector<8x128xf32>
    %372 = vector.extract_strided_slice %370 {offsets = [0, 0], sizes = [8, 32], strides = [1, 1]} : vector<8x128xf32> to vector<8x32xf32>
    %373 = vector.extract_strided_slice %370 {offsets = [0, 32], sizes = [8, 32], strides = [1, 1]} : vector<8x128xf32> to vector<8x32xf32>
    %374 = vector.extract_strided_slice %371 {offsets = [0, 64], sizes = [8, 32], strides = [1, 1]} : vector<8x128xf32> to vector<8x32xf32>
    %375 = vector.extract_strided_slice %370 {offsets = [0, 96], sizes = [8, 32], strides = [1, 1]} : vector<8x128xf32> to vector<8x32xf32>
    %376 = arith.mulf %373, %358 : vector<8x32xf32>
    %377 = arith.mulf %372, %374 : vector<8x32xf32>
    %378 = arith.addf %376, %377 : vector<8x32xf32>
    %379 = math.tanh %378 : vector<8x32xf32>
    %380 = arith.mulf %375, %379 : vector<8x32xf32>
    %c40_150 = arith.constant 40 : index
    %c0_151 = arith.constant 0 : index
    %381 = vector.load %arg6[%c40_150, %c0_151] : memref<64x32xf32, #tpu.memory_space<vmem>>, vector<8x32xf32>
    tpu.vector_store %arg6[%c40_150, %c0_151], %380 {strides = array<i32>} : memref<64x32xf32, #tpu.memory_space<vmem>>, vector<8x32xf32>,
    %382 = vector.extract_strided_slice %259 {offsets = [48, 0], sizes = [8, 128], strides = [1, 1]} : vector<64x128xf32> to vector<8x128xf32>
    %383 = arith.truncf %380 : vector<8x32xf32> to vector<8x32xbf16>
    %cst_152 = arith.constant dense<0.000000e+00> : vector<8x128xf32>
    %384 = tpu.matmul %383, %254, %cst_152 {dimension_numbers = #tpu.dot_dimension_numbers<[1], [0], [0], [1], [0, 0, 1, 1], [], []>} : vector<8x32xbf16>, vector<32x128xbf16>, vector<8x128xf32> -> vector<8x128xf32>
    %385 = arith.addf %382, %384 : vector<8x128xf32>
    %386 = arith.negf %385 : vector<8x128xf32>
    %387 = math.exp %386 : vector<8x128xf32>
    %cst_153 = arith.constant 1.000000e+00 : f32
    %388 = vector.broadcast %cst_153 : f32 to vector<8x128xf32>
    %389 = arith.addf %388, %387 : vector<8x128xf32>
    %390 = arith.divf %388, %389 : vector<8x128xf32>
    %391 = math.tanh %385 : vector<8x128xf32>
    %392 = vector.extract_strided_slice %390 {offsets = [0, 0], sizes = [8, 32], strides = [1, 1]} : vector<8x128xf32> to vector<8x32xf32>
    %393 = vector.extract_strided_slice %390 {offsets = [0, 32], sizes = [8, 32], strides = [1, 1]} : vector<8x128xf32> to vector<8x32xf32>
    %394 = vector.extract_strided_slice %391 {offsets = [0, 64], sizes = [8, 32], strides = [1, 1]} : vector<8x128xf32> to vector<8x32xf32>
    %395 = vector.extract_strided_slice %390 {offsets = [0, 96], sizes = [8, 32], strides = [1, 1]} : vector<8x128xf32> to vector<8x32xf32>
    %396 = arith.mulf %393, %378 : vector<8x32xf32>
    %397 = arith.mulf %392, %394 : vector<8x32xf32>
    %398 = arith.addf %396, %397 : vector<8x32xf32>
    %399 = math.tanh %398 : vector<8x32xf32>
    %400 = arith.mulf %395, %399 : vector<8x32xf32>
    %c48_154 = arith.constant 48 : index
    %c0_155 = arith.constant 0 : index
    %401 = vector.load %arg6[%c48_154, %c0_155] : memref<64x32xf32, #tpu.memory_space<vmem>>, vector<8x32xf32>
    tpu.vector_store %arg6[%c48_154, %c0_155], %400 {strides = array<i32>} : memref<64x32xf32, #tpu.memory_space<vmem>>, vector<8x32xf32>,
    %402 = vector.extract_strided_slice %259 {offsets = [56, 0], sizes = [8, 128], strides = [1, 1]} : vector<64x128xf32> to vector<8x128xf32>
    %403 = arith.truncf %400 : vector<8x32xf32> to vector<8x32xbf16>
    %cst_156 = arith.constant dense<0.000000e+00> : vector<8x128xf32>
    %404 = tpu.matmul %403, %254, %cst_156 {dimension_numbers = #tpu.dot_dimension_numbers<[1], [0], [0], [1], [0, 0, 1, 1], [], []>} : vector<8x32xbf16>, vector<32x128xbf16>, vector<8x128xf32> -> vector<8x128xf32>
    %405 = arith.addf %402, %404 : vector<8x128xf32>
    %406 = arith.negf %405 : vector<8x128xf32>
    %407 = math.exp %406 : vector<8x128xf32>
    %cst_157 = arith.constant 1.000000e+00 : f32
    %408 = vector.broadcast %cst_157 : f32 to vector<8x128xf32>
    %409 = arith.addf %408, %407 : vector<8x128xf32>
    %410 = arith.divf %408, %409 : vector<8x128xf32>
    %411 = math.tanh %405 : vector<8x128xf32>
    %412 = vector.extract_strided_slice %410 {offsets = [0, 0], sizes = [8, 32], strides = [1, 1]} : vector<8x128xf32> to vector<8x32xf32>
    %413 = vector.extract_strided_slice %410 {offsets = [0, 32], sizes = [8, 32], strides = [1, 1]} : vector<8x128xf32> to vector<8x32xf32>
    %414 = vector.extract_strided_slice %411 {offsets = [0, 64], sizes = [8, 32], strides = [1, 1]} : vector<8x128xf32> to vector<8x32xf32>
    %415 = vector.extract_strided_slice %410 {offsets = [0, 96], sizes = [8, 32], strides = [1, 1]} : vector<8x128xf32> to vector<8x32xf32>
    %416 = arith.mulf %413, %398 : vector<8x32xf32>
    %417 = arith.mulf %412, %414 : vector<8x32xf32>
    %418 = arith.addf %416, %417 : vector<8x32xf32>
    %419 = math.tanh %418 : vector<8x32xf32>
    %420 = arith.mulf %415, %419 : vector<8x32xf32>
    %c56_158 = arith.constant 56 : index
    %c0_159 = arith.constant 0 : index
    %421 = vector.load %arg6[%c56_158, %c0_159] : memref<64x32xf32, #tpu.memory_space<vmem>>, vector<8x32xf32>
    tpu.vector_store %arg6[%c56_158, %c0_159], %420 {strides = array<i32>} : memref<64x32xf32, #tpu.memory_space<vmem>>, vector<8x32xf32>,
    %c72 = arith.constant 72 : index
    %c0_160 = arith.constant 0 : index
    %422 = vector.load %arg3[%c72, %c0_160] : memref<112x128xf32, #tpu.memory_space<vmem>>, vector<32x128xf32>
    %c104 = arith.constant 104 : index
    %c0_161 = arith.constant 0 : index
    %423 = vector.load %arg3[%c104, %c0_161] : memref<112x128xf32, #tpu.memory_space<vmem>>, vector<1x128xf32>
    %cst_162 = arith.constant dense<0.000000e+00> : vector<8x128xf32>
    %424 = tpu.matmul %420, %422, %cst_162 {dimension_numbers = #tpu.dot_dimension_numbers<[1], [0], [0], [1], [0, 0, 1, 1], [], []>} : vector<8x32xf32>, vector<32x128xf32>, vector<8x128xf32> -> vector<8x128xf32>
    %425 = vector.broadcast %423 : vector<1x128xf32> to vector<8x128xf32>
    %426 = arith.addf %424, %425 : vector<8x128xf32>
    %c0_163 = arith.constant 0 : index
    %c0_164 = arith.constant 0 : index
    %427 = vector.load %arg4[%c0_163, %c0_164] : memref<8x128xf32, #tpu.memory_space<vmem>>, vector<8x128xf32>
    tpu.vector_store %arg4[%c0_163, %c0_164], %426 {strides = array<i32>} : memref<8x128xf32, #tpu.memory_space<vmem>>, vector<8x128xf32>,
    return
  }
}

</mosaic_0001>

<llo_original>
// kernel: forward.1
$region0: #{forward.1}
  #allocation0 [shape = 'u32[]', space=smem, size = 0x4, offset = 0x4, fixed_abs, tag = 'smem constant byte address 0x4 - core index']
  #allocation1 [shape = 'u32[144,128]{1,0:T(1,128)}', space=vmem, size = 0x12000, scoped, tag = 'internal scratch']
  #allocation2 [shape = 'f32[64,32]{1,0:T(8,128)}', space=vmem, size = 0x8000, scoped, tag = 'scratch operand']
  #allocation3 [shape = 'f32[64,32]{1,0:T(8,128)}', space=vmem, size = 0x8000, scoped, tag = 'scratch operand']
  %s0 = inlined_call_operand.hbm [shape: s32[2,8], index: 0, kind: input, shape index: {}]
  %s1 = inlined_call_operand.hbm [shape: f32[50,1,32], index: 1, kind: input, shape index: {}]
  %s2 = inlined_call_operand.hbm [shape: bf16[128,128], index: 2, kind: input, shape index: {}]
  %s3 = inlined_call_operand.hbm [shape: f32[112,128], index: 3, kind: input, shape index: {}]
  %s4 = inlined_call_operand.vmem [shape: f32[8,128], index: 4, kind: output, shape index: {}]
  %s5 = sld [smem:[#allocation0]]
  $region42: #{forward.1} parent=0
    _
  %s7 = ssub.s32 1, %s5
  %s8 = scalar_select 0, %s7, %s5
  $region1: #{forward.1} parent=0
    #allocation4 [shape = 'u8[1024]{0}', space=smem, size = 0x400, scoped, tag = 'input window, operand 0, single buffered']
    #allocation5 [shape = 's32[1]{0}', space=sflag, size = 0x4, scoped, tag = 'scoped memory for forward.1']
    #allocation6 [shape = 's32[1]{0}', space=sflag, size = 0x4, scoped, tag = 'scoped memory for forward.1']
    #allocation7 [shape = 'u8[25600]{0}', space=vmem, size = 0x6400, scoped, tag = 'input window, operand 1, single buffered']
    #allocation8 [shape = 'u8[32768]{0}', space=vmem, size = 0x8000, scoped, tag = 'input window, operand 2, single buffered']
    #allocation9 [shape = 's32[1]{0}', space=sflag, size = 0x4, scoped, tag = 'scoped memory for forward.1']
    #allocation10 [shape = 'u8[57344]{0}', space=vmem, size = 0xe000, scoped, tag = 'input window, operand 3, single buffered']
    %9 = vsyncpa [#allocation6], 0
    %10 = vsyncpa [#allocation5], 0
    %11 = vsyncpa [#allocation9], 0
    // Predicated region
    $region2: #{forward.1} parent=1 // pred_check
      _
    $region3: #{forward.1} parent=1 // pred_check_branch
      %13 = sbr.rel (0) target = $region5
    $region4: #{forward.1} parent=1 // pred_region
      %s15 = ssub.s32 32, 32
      %16 = vsyncadd [#allocation6], %s15
      %19 = dma.hbm_to_smem %s0, 32, [#allocation4], [#allocation6]
    $region5: #{forward.1} parent=1 // pred_fallthru
      _
    // Predicated region
    $region6: #{forward.1} parent=1 // pred_check
      _
    $region7: #{forward.1} parent=1 // pred_check_branch
      %21 = sbr.rel (0) target = $region9
    $region8: #{forward.1} parent=1 // pred_region
      %s23 = ssub.s32 800, 800
      %24 = vsyncadd [#allocation5], %s23
      %s25 = sshll.u32 [#allocation7], 4
      %s26 = int_to_ptr.vmem [resolvable:$true] %s25
      %31 = dma.hbm_to_vmem [thread:$0]  %s1, 800, %s26, [#allocation5], 16, 16, 1
    $region9: #{forward.1} parent=1 // pred_fallthru
      _
    // Predicated region
    $region10: #{forward.1} parent=1 // pred_check
      _
    $region11: #{forward.1} parent=1 // pred_check_branch
      %33 = sbr.rel (0) target = $region13
    $region12: #{forward.1} parent=1 // pred_region
      %s35 = ssub.s32 1024, 1024
      %36 = vsyncadd [#allocation9], %s35
      %s37 = sshll.u32 [#allocation8], 4
      %s38 = int_to_ptr.vmem [resolvable:$true] %s37
      %43 = dma.hbm_to_vmem [thread:$0]  %s2, 1024, %s38, [#allocation9], 64, 64, 4
    $region13: #{forward.1} parent=1 // pred_fallthru
      _
    // Predicated region
    $region14: #{forward.1} parent=1 // pred_check
      _
    $region15: #{forward.1} parent=1 // pred_check_branch
      %45 = sbr.rel (0) target = $region17
    $region16: #{forward.1} parent=1 // pred_region
      %s47 = ssub.s32 1792, 1792
      %48 = vsyncadd [#allocation9], %s47
      %s49 = sshll.u32 [#allocation10], 4
      %s50 = int_to_ptr.vmem [resolvable:$true] %s49
      %55 = dma.hbm_to_vmem [thread:$0]  %s3, 1792, %s50, [#allocation9], 128, 128, 8
    $region17: #{forward.1} parent=1 // pred_fallthru
      _
    // Predicated region
    $region18: #{forward.1} parent=1 // pred_check
      _
    $region19: #{forward.1} parent=1 // pred_check_branch
      %57 = sbr.rel (0) target = $region21
    $region20: #{forward.1} parent=1 // pred_region
      %58 = dma.done [#allocation6], 32
    $region21: #{forward.1} parent=1 // pred_fallthru
      _
    // Predicated region
    $region22: #{forward.1} parent=1 // pred_check
      _
    $region23: #{forward.1} parent=1 // pred_check_branch
      %60 = sbr.rel (0) target = $region25
    $region24: #{forward.1} parent=1 // pred_region
      %61 = dma.done [#allocation5], 800
    $region25: #{forward.1} parent=1 // pred_fallthru
      _
    // Predicated region
    $region26: #{forward.1} parent=1 // pred_check
      _
    $region27: #{forward.1} parent=1 // pred_check_branch
      %63 = sbr.rel (0) target = $region29
    $region28: #{forward.1} parent=1 // pred_region
      %64 = dma.done [#allocation9], 1024
    $region29: #{forward.1} parent=1 // pred_fallthru
      _
    // Predicated region
    $region30: #{forward.1} parent=1 // pred_check
      _
    $region31: #{forward.1} parent=1 // pred_check_branch
      %66 = sbr.rel (0) target = $region33
    $region32: #{forward.1} parent=1 // pred_region
      %67 = dma.done [#allocation9], 1792
    $region33: #{forward.1} parent=1 // pred_fallthru
      _
    %68 = sfence
    %vm70 = vcmask 261120
    %71 = vst.msk [vmem:[#allocation2] sm:$0xff] %vm70, 0.0
    %72 = vst.msk [vmem:[#allocation2 + $0x8] sm:$0xff] %vm70, 0.0
    %73 = vst.msk [vmem:[#allocation2 + $0x10] sm:$0xff] %vm70, 0.0
    %74 = vst.msk [vmem:[#allocation2 + $0x18] sm:$0xff] %vm70, 0.0
    %75 = vst.msk [vmem:[#allocation2 + $0x20] sm:$0xff] %vm70, 0.0
    %76 = vst.msk [vmem:[#allocation2 + $0x28] sm:$0xff] %vm70, 0.0
    %77 = vst.msk [vmem:[#allocation2 + $0x30] sm:$0xff] %vm70, 0.0
    %78 = vst.msk [vmem:[#allocation2 + $0x38] sm:$0xff] %vm70, 0.0
    %s79 = sld [smem:[#allocation4]]
    %s80 = scalar_lea.vmem [#allocation7], %s79
    %v81 = vld [vmem:[%s80] sm:$0x1]
    %vm82 = vcmask 253952
    %83 = vst.msk [vmem:[#allocation2] sm:$0x1] %vm82, %v81
    %s84 = sld [smem:[#allocation4 + $0x80]]
    %s85 = scalar_lea.vmem [#allocation7], %s84
    %v86 = vld [vmem:[%s85] sm:$0x1]
    %87 = vst.msk [vmem:[#allocation2 + $0x1] sm:$0x1] %vm82, %v86
    %s88 = sld [smem:[#allocation4 + $0x1]]
    %s89 = scalar_lea.vmem [#allocation7], %s88
    %v90 = vld [vmem:[%s89] sm:$0x1]
    %91 = vst.msk [vmem:[#allocation2 + $0x8] sm:$0x1] %vm82, %v90
    %s92 = sld [smem:[#allocation4 + $0x81]]
    %s93 = scalar_lea.vmem [#allocation7], %s92
    %v94 = vld [vmem:[%s93] sm:$0x1]
    %95 = vst.msk [vmem:[#allocation2 + $0x9] sm:$0x1] %vm82, %v94
    %s96 = sld [smem:[#allocation4 + $0x2]]
    %s97 = scalar_lea.vmem [#allocation7], %s96
    %v98 = vld [vmem:[%s97] sm:$0x1]
    %99 = vst.msk [vmem:[#allocation2 + $0x10] sm:$0x1] %vm82, %v98
    %s100 = sld [smem:[#allocation4 + $0x82]]
    %s101 = scalar_lea.vmem [#allocation7], %s100
    %v102 = vld [vmem:[%s101] sm:$0x1]
    %103 = vst.msk [vmem:[#allocation2 + $0x11] sm:$0x1] %vm82, %v102
    %s104 = sld [smem:[#allocation4 + $0x3]]
    %s105 = scalar_lea.vmem [#allocation7], %s104
    %v106 = vld [vmem:[%s105] sm:$0x1]
    %107 = vst.msk [vmem:[#allocation2 + $0x18] sm:$0x1] %vm82, %v106
    %s108 = sld [smem:[#allocation4 + $0x83]]
    %s109 = scalar_lea.vmem [#allocation7], %s108
    %v110 = vld [vmem:[%s109] sm:$0x1]
    %111 = vst.msk [vmem:[#allocation2 + $0x19] sm:$0x1] %vm82, %v110
    %s112 = sld [smem:[#allocation4 + $0x4]]
    %s113 = scalar_lea.vmem [#allocation7], %s112
    %v114 = vld [vmem:[%s113] sm:$0x1]
    %115 = vst.msk [vmem:[#allocation2 + $0x20] sm:$0x1] %vm82, %v114
    %s116 = sld [smem:[#allocation4 + $0x84]]
    %s117 = scalar_lea.vmem [#allocation7], %s116
    %v118 = vld [vmem:[%s117] sm:$0x1]
    %119 = vst.msk [vmem:[#allocation2 + $0x21] sm:$0x1] %vm82, %v118
    %s120 = sld [smem:[#allocation4 + $0x5]]
    %s121 = scalar_lea.vmem [#allocation7], %s120
    %v122 = vld [vmem:[%s121] sm:$0x1]
    %123 = vst.msk [vmem:[#allocation2 + $0x28] sm:$0x1] %vm82, %v122
    %s124 = sld [smem:[#allocation4 + $0x85]]
    %s125 = scalar_lea.vmem [#allocation7], %s124
    %v126 = vld [vmem:[%s125] sm:$0x1]
    %127 = vst.msk [vmem:[#allocation2 + $0x29] sm:$0x1] %vm82, %v126
    %s128 = sld [smem:[#allocation4 + $0x6]]
    %s129 = scalar_lea.vmem [#allocation7], %s128
    %v130 = vld [vmem:[%s129] sm:$0x1]
    %131 = vst.msk [vmem:[#allocation2 + $0x30] sm:$0x1] %vm82, %v130
    %s132 = sld [smem:[#allocation4 + $0x86]]
    %s133 = scalar_lea.vmem [#allocation7], %s132
    %v134 = vld [vmem:[%s133] sm:$0x1]
    %135 = vst.msk [vmem:[#allocation2 + $0x31] sm:$0x1] %vm82, %v134
    %s136 = sld [smem:[#allocation4 + $0x7]]
    %s137 = scalar_lea.vmem [#allocation7], %s136
    %v138 = vld [vmem:[%s137] sm:$0x1]
    %139 = vst.msk [vmem:[#allocation2 + $0x38] sm:$0x1] %vm82, %v138
    %s140 = sld [smem:[#allocation4 + $0x87]]
    %s141 = scalar_lea.vmem [#allocation7], %s140
    %v142 = vld [vmem:[%s141] sm:$0x1]
    %143 = vst.msk [vmem:[#allocation2 + $0x39] sm:$0x1] %vm82, %v142
    %v144 = vld [vmem:[#allocation2] sm:$0xff]
    %v145 = vld [vmem:[#allocation2 + $0x8] sm:$0xff]
    %v146 = vld [vmem:[#allocation2 + $0x10] sm:$0xff]
    %v147 = vld [vmem:[#allocation2 + $0x18] sm:$0xff]
    %v148 = vld [vmem:[#allocation2 + $0x20] sm:$0xff]
    %v149 = vld [vmem:[#allocation2 + $0x28] sm:$0xff]
    %v150 = vld [vmem:[#allocation2 + $0x30] sm:$0xff]
    %v151 = vld [vmem:[#allocation2 + $0x38] sm:$0xff]
    %v152 = vld [vmem:[#allocation8] sm:$0xf]
    %v153 = vld [vmem:[#allocation8 + $0x4] sm:$0xf]
    %v154 = vld [vmem:[#allocation8 + $0x8] sm:$0xf]
    %v155 = vld [vmem:[#allocation8 + $0xc] sm:$0xf]
    %v156 = vld [vmem:[#allocation8 + $0x10] sm:$0xf]
    %v157 = vld [vmem:[#allocation8 + $0x14] sm:$0xf]
    %v158 = vld [vmem:[#allocation8 + $0x18] sm:$0xf]
    %v159 = vld [vmem:[#allocation8 + $0x1c] sm:$0xf]
    %v160 = vld [vmem:[#allocation10] sm:$0x1]
    %v161 = vpack.c.bf16 %v145, %v144
    %v162 = vpack.c.bf16 %v147, %v146
    %v163 = vpack.c.bf16 %v149, %v148
    %v164 = vpack.c.bf16 %v151, %v150
    %v165 = vlaneseq
    %v166 = vshrl.u32 %v165, 7
    %v167 = vsub.s32 0, %v166
    %v168 = vrot.slane %v160, %v167
    %v173 = vunpack.c.l.b16 %v152
    %v174 = vunpack.c.l.b16 %v153
    %v175 = vunpack.c.l.b16 %v154
    %v176 = vunpack.c.l.b16 %v155
    %v177 = vpack.c.b16 %v174, %v173
    %v178 = vpack.c.b16 %v176, %v175
    %v182 = vsel %vm70, %v161, 0
    %v185 = vsel %vm70, %v162, 0
    %v188 = vsel %vm70, %v163, 0
    %v191 = vsel %vm70, %v164, 0
    %193 = vmatprep.subr.bf16.mxu0 0
    %194 = vmatpush1.bf16.msra.mxu0 0
    %195 = vmatprep.subr.bf16.mxu0 0
    %196 = vmatpush1.bf16.msra.mxu0 0
    %197 = vmatprep.subr.bf16.mxu0 0
    %198 = vmatpush1.bf16.msra.mxu0 0
    %199 = vmatprep.subr.bf16.mxu0 0
    %200 = vmatpush1.bf16.msra.mxu0 0
    %201 = vmatprep.subr.bf16.mxu0 0
    %202 = vmatpush1.bf16.msra.mxu0 0
    %203 = vmatprep.subr.bf16.mxu0 0
    %204 = vmatpush1.bf16.msra.mxu0 0
    %205 = vmatprep.subr.bf16.mxu0 0
    %206 = vmatpush1.bf16.msra.mxu0 %v178
    %207 = vmatprep.subr.bf16.mxu0 0
    %208 = vmatpush1.bf16.msra.mxu0 %v177
    %209 = vmatprep.subr.bf16.mxu0 0
    %210 = vmatpush2.bf16.msra.mxu0 0
    %211 = vmatprep.subr.bf16.mxu0 0
    %212 = vmatpush2.bf16.msra.mxu0 0
    %213 = vmatprep.subr.bf16.mxu0 0
    %214 = vmatpush2.bf16.msra.mxu0 0
    %215 = vmatprep.subr.bf16.mxu0 0
    %216 = vmatpush2.bf16.msra.mxu0 0
    %217 = vmatprep.subr.bf16.mxu0 0
    %218 = vmatpush2.bf16.msra.mxu0 0
    %219 = vmatprep.subr.bf16.mxu0 0
    %220 = vmatpush2.bf16.msra.mxu0 0
    %221 = vmatprep.subr.bf16.mxu0 0
    %222 = vmatpush2.bf16.msra.mxu0 0
    %223 = vmatprep.subr.bf16.mxu0 0
    %224 = vmatpush2.bf16.msra.mxu0 0
    %225 = vmatprep.mubr.bf16.mxu0 0
    %226 = vmatmul.mubr.bf16.gmra.mxu0 %v182
    %v227 = vpop.f32.mrf.mxu0
    %v228 = vadd.f32 %v168, %v227
    %v229 = vpop.f32.mrf.mxu0
    %v230 = vpop.f32.mrf.mxu0
    %v231 = vadd.f32 %v168, %v230
    %v232 = vpop.f32.mrf.mxu0
    %233 = vmatprep.mubr.bf16.mxu0 0
    %234 = vmatmul.mubr.bf16.gmra.mxu0 %v185
    %v235 = vpop.f32.mrf.mxu0
    %v236 = vadd.f32 %v168, %v235
    %v237 = vpop.f32.mrf.mxu0
    %v238 = vpop.f32.mrf.mxu0
    %v239 = vadd.f32 %v168, %v238
    %v240 = vpop.f32.mrf.mxu0
    %241 = vmatprep.mubr.bf16.mxu0 0
    %242 = vmatmul.mubr.bf16.gmra.mxu0 %v188
    %v243 = vpop.f32.mrf.mxu0
    %v244 = vadd.f32 %v168, %v243
    %v245 = vpop.f32.mrf.mxu0
    %v246 = vpop.f32.mrf.mxu0
    %v247 = vadd.f32 %v168, %v246
    %v248 = vpop.f32.mrf.mxu0
    %249 = vmatprep.mubr.bf16.mxu0 0
    %250 = vmatmul.mubr.bf16.gmra.mxu0 %v191
    %v251 = vpop.f32.mrf.mxu0
    %v252 = vadd.f32 %v168, %v251
    %v253 = vpop.f32.mrf.mxu0
    %v254 = vpop.f32.mrf.mxu0
    %v255 = vadd.f32 %v168, %v254
    %v256 = vpop.f32.mrf.mxu0
    %257 = vdwg.mxu0
    %v262 = vunpack.c.l.b16 %v156
    %v263 = vunpack.c.l.b16 %v157
    %v264 = vunpack.c.l.b16 %v158
    %v265 = vunpack.c.l.b16 %v159
    %v266 = vpack.c.b16 %v263, %v262
    %v267 = vpack.c.b16 %v265, %v264
    %v271 = vsel %vm70, 0, 0
    %273 = vmatprep.subr.bf16.mxu0 0
    %274 = vmatpush1.bf16.msra.mxu0 0
    %275 = vmatprep.subr.bf16.mxu0 0
    %276 = vmatpush1.bf16.msra.mxu0 0
    %277 = vmatprep.subr.bf16.mxu0 0
    %278 = vmatpush1.bf16.msra.mxu0 0
    %279 = vmatprep.subr.bf16.mxu0 0
    %280 = vmatpush1.bf16.msra.mxu0 0
    %281 = vmatprep.subr.bf16.mxu0 0
    %282 = vmatpush1.bf16.msra.mxu0 0
    %283 = vmatprep.subr.bf16.mxu0 0
    %284 = vmatpush1.bf16.msra.mxu0 0
    %285 = vmatprep.subr.bf16.mxu0 0
    %286 = vmatpush1.bf16.msra.mxu0 %v267
    %287 = vmatprep.subr.bf16.mxu0 0
    %288 = vmatpush1.bf16.msra.mxu0 %v266
    %289 = vmatprep.subr.bf16.mxu0 0
    %290 = vmatpush2.bf16.msra.mxu0 0
    %291 = vmatprep.subr.bf16.mxu0 0
    %292 = vmatpush2.bf16.msra.mxu0 0
    %293 = vmatprep.subr.bf16.mxu0 0
    %294 = vmatpush2.bf16.msra.mxu0 0
    %295 = vmatprep.subr.bf16.mxu0 0
    %296 = vmatpush2.bf16.msra.mxu0 0
    %297 = vmatprep.subr.bf16.mxu0 0
    %298 = vmatpush2.bf16.msra.mxu0 0
    %299 = vmatprep.subr.bf16.mxu0 0
    %300 = vmatpush2.bf16.msra.mxu0 0
    %301 = vmatprep.subr.bf16.mxu0 0
    %302 = vmatpush2.bf16.msra.mxu0 0
    %303 = vmatprep.subr.bf16.mxu0 0
    %304 = vmatpush2.bf16.msra.mxu0 0
    %305 = vmatprep.mubr.bf16.mxu0 0
    %306 = vmatmul.mubr.bf16.gmra.mxu0 %v271
    %v307 = vpop.f32.mrf.mxu0
    %v308 = vadd.f32 0.0, %v307
    %v309 = vpop.f32.mrf.mxu0
    %v310 = vpop.f32.mrf.mxu0
    %v311 = vpop.f32.mrf.mxu0
    %312 = vdwg.mxu0
    %v313 = vadd.f32 %v228, %v308
    %v314 = vxor.u32 %v313, 2147483648
    %v315 = vmul.f32 %v314, 1.442695
    %v316 = vpow.pop %v315
    %v317 = vadd.f32 %v316, 1.0
    %v318 = vrcp.pop %v317
    %v319 = vmul.f32 1.0, %v318
    %v320 = vtanh.pop %v313
    %v321 = vmul.f32 %v319, 0.0
    %323 = vrot.lane.b32.xlu0 %v320, 64
    %v324 = vpop.permute.xlu0 %323
    %v326 = vmul.f32 %v319, %v324
    %328 = vrot.lane.b32.xlu0 %v326, 32
    %v329 = vpop.permute.xlu0 %328
    %v331 = vadd.f32 %v321, %v329
    %v332 = vtanh.pop %v331
    %334 = vrot.lane.b32.xlu0 %v332, 64
    %v335 = vpop.permute.xlu0 %334
    %v337 = vmul.f32 %v319, %v335
    %339 = vrot.lane.b32.xlu0 %v337, 32
    %v340 = vpop.permute.xlu0 %339
    %342 = vst.msk [vmem:[#allocation3] sm:$0xff] %vm70, %v340
    %v343 = vpack.c.bf16 %v337, %v337
    %345 = vrot.lane.b32.xlu0 %v343, 32
    %v346 = vpop.permute.xlu0 %345
    %v348 = vsel %vm70, %v346, 0
    %350 = vmatprep.subr.bf16.mxu0 0
    %351 = vmatpush1.bf16.msra.mxu0 0
    %352 = vmatprep.subr.bf16.mxu0 0
    %353 = vmatpush1.bf16.msra.mxu0 0
    %354 = vmatprep.subr.bf16.mxu0 0
    %355 = vmatpush1.bf16.msra.mxu0 0
    %356 = vmatprep.subr.bf16.mxu0 0
    %357 = vmatpush1.bf16.msra.mxu0 0
    %358 = vmatprep.subr.bf16.mxu0 0
    %359 = vmatpush1.bf16.msra.mxu0 0
    %360 = vmatprep.subr.bf16.mxu0 0
    %361 = vmatpush1.bf16.msra.mxu0 0
    %362 = vmatprep.subr.bf16.mxu0 0
    %363 = vmatpush1.bf16.msra.mxu0 %v267
    %364 = vmatprep.subr.bf16.mxu0 0
    %365 = vmatpush1.bf16.msra.mxu0 %v266
    %366 = vmatprep.subr.bf16.mxu0 0
    %367 = vmatpush2.bf16.msra.mxu0 0
    %368 = vmatprep.subr.bf16.mxu0 0
    %369 = vmatpush2.bf16.msra.mxu0 0
    %370 = vmatprep.subr.bf16.mxu0 0
    %371 = vmatpush2.bf16.msra.mxu0 0
    %372 = vmatprep.subr.bf16.mxu0 0
    %373 = vmatpush2.bf16.msra.mxu0 0
    %374 = vmatprep.subr.bf16.mxu0 0
    %375 = vmatpush2.bf16.msra.mxu0 0
    %376 = vmatprep.subr.bf16.mxu0 0
    %377 = vmatpush2.bf16.msra.mxu0 0
    %378 = vmatprep.subr.bf16.mxu0 0
    %379 = vmatpush2.bf16.msra.mxu0 0
    %380 = vmatprep.subr.bf16.mxu0 0
    %381 = vmatpush2.bf16.msra.mxu0 0
    %382 = vmatprep.mubr.bf16.mxu0 0
    %383 = vmatmul.mubr.bf16.gmra.mxu0 %v348
    %v384 = vpop.f32.mrf.mxu0
    %v385 = vadd.f32 0.0, %v384
    %v386 = vpop.f32.mrf.mxu0
    %v387 = vpop.f32.mrf.mxu0
    %v388 = vpop.f32.mrf.mxu0
    %389 = vdwg.mxu0
    %v390 = vadd.f32 %v231, %v385
    %v391 = vxor.u32 %v390, 2147483648
    %v392 = vmul.f32 %v391, 1.442695
    %v393 = vpow.pop %v392
    %v394 = vadd.f32 %v393, 1.0
    %v395 = vrcp.pop %v394
    %v396 = vmul.f32 1.0, %v395
    %v397 = vtanh.pop %v390
    %v398 = vmul.f32 %v396, %v331
    %400 = vrot.lane.b32.xlu0 %v397, 64
    %v401 = vpop.permute.xlu0 %400
    %v403 = vmul.f32 %v396, %v401
    %405 = vrot.lane.b32.xlu0 %v403, 32
    %v406 = vpop.permute.xlu0 %405
    %v408 = vadd.f32 %v398, %v406
    %v409 = vtanh.pop %v408
    %411 = vrot.lane.b32.xlu0 %v409, 64
    %v412 = vpop.permute.xlu0 %411
    %v414 = vmul.f32 %v396, %v412
    %416 = vrot.lane.b32.xlu0 %v414, 32
    %v417 = vpop.permute.xlu0 %416
    %419 = vst.msk [vmem:[#allocation3 + $0x8] sm:$0xff] %vm70, %v417
    %v420 = vpack.c.bf16 %v414, %v414
    %422 = vrot.lane.b32.xlu0 %v420, 32
    %v423 = vpop.permute.xlu0 %422
    %v425 = vsel %vm70, %v423, 0
    %427 = vmatprep.subr.bf16.mxu0 0
    %428 = vmatpush1.bf16.msra.mxu0 0
    %429 = vmatprep.subr.bf16.mxu0 0
    %430 = vmatpush1.bf16.msra.mxu0 0
    %431 = vmatprep.subr.bf16.mxu0 0
    %432 = vmatpush1.bf16.msra.mxu0 0
    %433 = vmatprep.subr.bf16.mxu0 0
    %434 = vmatpush1.bf16.msra.mxu0 0
    %435 = vmatprep.subr.bf16.mxu0 0
    %436 = vmatpush1.bf16.msra.mxu0 0
    %437 = vmatprep.subr.bf16.mxu0 0
    %438 = vmatpush1.bf16.msra.mxu0 0
    %439 = vmatprep.subr.bf16.mxu0 0
    %440 = vmatpush1.bf16.msra.mxu0 %v267
    %441 = vmatprep.subr.bf16.mxu0 0
    %442 = vmatpush1.bf16.msra.mxu0 %v266
    %443 = vmatprep.subr.bf16.mxu0 0
    %444 = vmatpush2.bf16.msra.mxu0 0
    %445 = vmatprep.subr.bf16.mxu0 0
    %446 = vmatpush2.bf16.msra.mxu0 0
    %447 = vmatprep.subr.bf16.mxu0 0
    %448 = vmatpush2.bf16.msra.mxu0 0
    %449 = vmatprep.subr.bf16.mxu0 0
    %450 = vmatpush2.bf16.msra.mxu0 0
    %451 = vmatprep.subr.bf16.mxu0 0
    %452 = vmatpush2.bf16.msra.mxu0 0
    %453 = vmatprep.subr.bf16.mxu0 0
    %454 = vmatpush2.bf16.msra.mxu0 0
    %455 = vmatprep.subr.bf16.mxu0 0
    %456 = vmatpush2.bf16.msra.mxu0 0
    %457 = vmatprep.subr.bf16.mxu0 0
    %458 = vmatpush2.bf16.msra.mxu0 0
    %459 = vmatprep.mubr.bf16.mxu0 0
    %460 = vmatmul.mubr.bf16.gmra.mxu0 %v425
    %v461 = vpop.f32.mrf.mxu0
    %v462 = vadd.f32 0.0, %v461
    %v463 = vpop.f32.mrf.mxu0
    %v464 = vpop.f32.mrf.mxu0
    %v465 = vpop.f32.mrf.mxu0
    %466 = vdwg.mxu0
    %v467 = vadd.f32 %v236, %v462
    %v468 = vxor.u32 %v467, 2147483648
    %v469 = vmul.f32 %v468, 1.442695
    %v470 = vpow.pop %v469
    %v471 = vadd.f32 %v470, 1.0
    %v472 = vrcp.pop %v471
    %v473 = vmul.f32 1.0, %v472
    %v474 = vtanh.pop %v467
    %v475 = vmul.f32 %v473, %v408
    %477 = vrot.lane.b32.xlu0 %v474, 64
    %v478 = vpop.permute.xlu0 %477
    %v480 = vmul.f32 %v473, %v478
    %482 = vrot.lane.b32.xlu0 %v480, 32
    %v483 = vpop.permute.xlu0 %482
    %v485 = vadd.f32 %v475, %v483
    %v486 = vtanh.pop %v485
    %488 = vrot.lane.b32.xlu0 %v486, 64
    %v489 = vpop.permute.xlu0 %488
    %v491 = vmul.f32 %v473, %v489
    %493 = vrot.lane.b32.xlu0 %v491, 32
    %v494 = vpop.permute.xlu0 %493
    %496 = vst.msk [vmem:[#allocation3 + $0x10] sm:$0xff] %vm70, %v494
    %v497 = vpack.c.bf16 %v491, %v491
    %499 = vrot.lane.b32.xlu0 %v497, 32
    %v500 = vpop.permute.xlu0 %499
    %v502 = vsel %vm70, %v500, 0
    %504 = vmatprep.subr.bf16.mxu0 0
    %505 = vmatpush1.bf16.msra.mxu0 0
    %506 = vmatprep.subr.bf16.mxu0 0
    %507 = vmatpush1.bf16.msra.mxu0 0
    %508 = vmatprep.subr.bf16.mxu0 0
    %509 = vmatpush1.bf16.msra.mxu0 0
    %510 = vmatprep.subr.bf16.mxu0 0
    %511 = vmatpush1.bf16.msra.mxu0 0
    %512 = vmatprep.subr.bf16.mxu0 0
    %513 = vmatpush1.bf16.msra.mxu0 0
    %514 = vmatprep.subr.bf16.mxu0 0
    %515 = vmatpush1.bf16.msra.mxu0 0
    %516 = vmatprep.subr.bf16.mxu0 0
    %517 = vmatpush1.bf16.msra.mxu0 %v267
    %518 = vmatprep.subr.bf16.mxu0 0
    %519 = vmatpush1.bf16.msra.mxu0 %v266
    %520 = vmatprep.subr.bf16.mxu0 0
    %521 = vmatpush2.bf16.msra.mxu0 0
    %522 = vmatprep.subr.bf16.mxu0 0
    %523 = vmatpush2.bf16.msra.mxu0 0
    %524 = vmatprep.subr.bf16.mxu0 0
    %525 = vmatpush2.bf16.msra.mxu0 0
    %526 = vmatprep.subr.bf16.mxu0 0
    %527 = vmatpush2.bf16.msra.mxu0 0
    %528 = vmatprep.subr.bf16.mxu0 0
    %529 = vmatpush2.bf16.msra.mxu0 0
    %530 = vmatprep.subr.bf16.mxu0 0
    %531 = vmatpush2.bf16.msra.mxu0 0
    %532 = vmatprep.subr.bf16.mxu0 0
    %533 = vmatpush2.bf16.msra.mxu0 0
    %534 = vmatprep.subr.bf16.mxu0 0
    %535 = vmatpush2.bf16.msra.mxu0 0
    %536 = vmatprep.mubr.bf16.mxu0 0
    %537 = vmatmul.mubr.bf16.gmra.mxu0 %v502
    %v538 = vpop.f32.mrf.mxu0
    %v539 = vadd.f32 0.0, %v538
    %v540 = vpop.f32.mrf.mxu0
    %v541 = vpop.f32.mrf.mxu0
    %v542 = vpop.f32.mrf.mxu0
    %543 = vdwg.mxu0
    %v544 = vadd.f32 %v239, %v539
    %v545 = vxor.u32 %v544, 2147483648
    %v546 = vmul.f32 %v545, 1.442695
    %v547 = vpow.pop %v546
    %v548 = vadd.f32 %v547, 1.0
    %v549 = vrcp.pop %v548
    %v550 = vmul.f32 1.0, %v549
    %v551 = vtanh.pop %v544
    %v552 = vmul.f32 %v550, %v485
    %554 = vrot.lane.b32.xlu0 %v551, 64
    %v555 = vpop.permute.xlu0 %554
    %v557 = vmul.f32 %v550, %v555
    %559 = vrot.lane.b32.xlu0 %v557, 32
    %v560 = vpop.permute.xlu0 %559
    %v562 = vadd.f32 %v552, %v560
    %v563 = vtanh.pop %v562
    %565 = vrot.lane.b32.xlu0 %v563, 64
    %v566 = vpop.permute.xlu0 %565
    %v568 = vmul.f32 %v550, %v566
    %570 = vrot.lane.b32.xlu0 %v568, 32
    %v571 = vpop.permute.xlu0 %570
    %573 = vst.msk [vmem:[#allocation3 + $0x18] sm:$0xff] %vm70, %v571
    %v574 = vpack.c.bf16 %v568, %v568
    %576 = vrot.lane.b32.xlu0 %v574, 32
    %v577 = vpop.permute.xlu0 %576
    %v579 = vsel %vm70, %v577, 0
    %581 = vmatprep.subr.bf16.mxu0 0
    %582 = vmatpush1.bf16.msra.mxu0 0
    %583 = vmatprep.subr.bf16.mxu0 0
    %584 = vmatpush1.bf16.msra.mxu0 0
    %585 = vmatprep.subr.bf16.mxu0 0
    %586 = vmatpush1.bf16.msra.mxu0 0
    %587 = vmatprep.subr.bf16.mxu0 0
    %588 = vmatpush1.bf16.msra.mxu0 0
    %589 = vmatprep.subr.bf16.mxu0 0
    %590 = vmatpush1.bf16.msra.mxu0 0
    %591 = vmatprep.subr.bf16.mxu0 0
    %592 = vmatpush1.bf16.msra.mxu0 0
    %593 = vmatprep.subr.bf16.mxu0 0
    %594 = vmatpush1.bf16.msra.mxu0 %v267
    %595 = vmatprep.subr.bf16.mxu0 0
    %596 = vmatpush1.bf16.msra.mxu0 %v266
    %597 = vmatprep.subr.bf16.mxu0 0
    %598 = vmatpush2.bf16.msra.mxu0 0
    %599 = vmatprep.subr.bf16.mxu0 0
    %600 = vmatpush2.bf16.msra.mxu0 0
    %601 = vmatprep.subr.bf16.mxu0 0
    %602 = vmatpush2.bf16.msra.mxu0 0
    %603 = vmatprep.subr.bf16.mxu0 0
    %604 = vmatpush2.bf16.msra.mxu0 0
    %605 = vmatprep.subr.bf16.mxu0 0
    %606 = vmatpush2.bf16.msra.mxu0 0
    %607 = vmatprep.subr.bf16.mxu0 0
    %608 = vmatpush2.bf16.msra.mxu0 0
    %609 = vmatprep.subr.bf16.mxu0 0
    %610 = vmatpush2.bf16.msra.mxu0 0
    %611 = vmatprep.subr.bf16.mxu0 0
    %612 = vmatpush2.bf16.msra.mxu0 0
    %613 = vmatprep.mubr.bf16.mxu0 0
    %614 = vmatmul.mubr.bf16.gmra.mxu0 %v579
    %v615 = vpop.f32.mrf.mxu0
    %v616 = vadd.f32 0.0, %v615
    %v617 = vpop.f32.mrf.mxu0
    %v618 = vpop.f32.mrf.mxu0
    %v619 = vpop.f32.mrf.mxu0
    %620 = vdwg.mxu0
    %v621 = vadd.f32 %v244, %v616
    %v622 = vxor.u32 %v621, 2147483648
    %v623 = vmul.f32 %v622, 1.442695
    %v624 = vpow.pop %v623
    %v625 = vadd.f32 %v624, 1.0
    %v626 = vrcp.pop %v625
    %v627 = vmul.f32 1.0, %v626
    %v628 = vtanh.pop %v621
    %v629 = vmul.f32 %v627, %v562
    %631 = vrot.lane.b32.xlu0 %v628, 64
    %v632 = vpop.permute.xlu0 %631
    %v634 = vmul.f32 %v627, %v632
    %636 = vrot.lane.b32.xlu0 %v634, 32
    %v637 = vpop.permute.xlu0 %636
    %v639 = vadd.f32 %v629, %v637
    %v640 = vtanh.pop %v639
    %642 = vrot.lane.b32.xlu0 %v640, 64
    %v643 = vpop.permute.xlu0 %642
    %v645 = vmul.f32 %v627, %v643
    %647 = vrot.lane.b32.xlu0 %v645, 32
    %v648 = vpop.permute.xlu0 %647
    %650 = vst.msk [vmem:[#allocation3 + $0x20] sm:$0xff] %vm70, %v648
    %v651 = vpack.c.bf16 %v645, %v645
    %653 = vrot.lane.b32.xlu0 %v651, 32
    %v654 = vpop.permute.xlu0 %653
    %v656 = vsel %vm70, %v654, 0
    %658 = vmatprep.subr.bf16.mxu0 0
    %659 = vmatpush1.bf16.msra.mxu0 0
    %660 = vmatprep.subr.bf16.mxu0 0
    %661 = vmatpush1.bf16.msra.mxu0 0
    %662 = vmatprep.subr.bf16.mxu0 0
    %663 = vmatpush1.bf16.msra.mxu0 0
    %664 = vmatprep.subr.bf16.mxu0 0
    %665 = vmatpush1.bf16.msra.mxu0 0
    %666 = vmatprep.subr.bf16.mxu0 0
    %667 = vmatpush1.bf16.msra.mxu0 0
    %668 = vmatprep.subr.bf16.mxu0 0
    %669 = vmatpush1.bf16.msra.mxu0 0
    %670 = vmatprep.subr.bf16.mxu0 0
    %671 = vmatpush1.bf16.msra.mxu0 %v267
    %672 = vmatprep.subr.bf16.mxu0 0
    %673 = vmatpush1.bf16.msra.mxu0 %v266
    %674 = vmatprep.subr.bf16.mxu0 0
    %675 = vmatpush2.bf16.msra.mxu0 0
    %676 = vmatprep.subr.bf16.mxu0 0
    %677 = vmatpush2.bf16.msra.mxu0 0
    %678 = vmatprep.subr.bf16.mxu0 0
    %679 = vmatpush2.bf16.msra.mxu0 0
    %680 = vmatprep.subr.bf16.mxu0 0
    %681 = vmatpush2.bf16.msra.mxu0 0
    %682 = vmatprep.subr.bf16.mxu0 0
    %683 = vmatpush2.bf16.msra.mxu0 0
    %684 = vmatprep.subr.bf16.mxu0 0
    %685 = vmatpush2.bf16.msra.mxu0 0
    %686 = vmatprep.subr.bf16.mxu0 0
    %687 = vmatpush2.bf16.msra.mxu0 0
    %688 = vmatprep.subr.bf16.mxu0 0
    %689 = vmatpush2.bf16.msra.mxu0 0
    %690 = vmatprep.mubr.bf16.mxu0 0
    %691 = vmatmul.mubr.bf16.gmra.mxu0 %v656
    %v692 = vpop.f32.mrf.mxu0
    %v693 = vadd.f32 0.0, %v692
    %v694 = vpop.f32.mrf.mxu0
    %v695 = vpop.f32.mrf.mxu0
    %v696 = vpop.f32.mrf.mxu0
    %697 = vdwg.mxu0
    %v698 = vadd.f32 %v247, %v693
    %v699 = vxor.u32 %v698, 2147483648
    %v700 = vmul.f32 %v699, 1.442695
    %v701 = vpow.pop %v700
    %v702 = vadd.f32 %v701, 1.0
    %v703 = vrcp.pop %v702
    %v704 = vmul.f32 1.0, %v703
    %v705 = vtanh.pop %v698
    %v706 = vmul.f32 %v704, %v639
    %708 = vrot.lane.b32.xlu0 %v705, 64
    %v709 = vpop.permute.xlu0 %708
    %v711 = vmul.f32 %v704, %v709
    %713 = vrot.lane.b32.xlu0 %v711, 32
    %v714 = vpop.permute.xlu0 %713
    %v716 = vadd.f32 %v706, %v714
    %v717 = vtanh.pop %v716
    %719 = vrot.lane.b32.xlu0 %v717, 64
    %v720 = vpop.permute.xlu0 %719
    %v722 = vmul.f32 %v704, %v720
    %724 = vrot.lane.b32.xlu0 %v722, 32
    %v725 = vpop.permute.xlu0 %724
    %727 = vst.msk [vmem:[#allocation3 + $0x28] sm:$0xff] %vm70, %v725
    %v728 = vpack.c.bf16 %v722, %v722
    %730 = vrot.lane.b32.xlu0 %v728, 32
    %v731 = vpop.permute.xlu0 %730
    %v733 = vsel %vm70, %v731, 0
    %735 = vmatprep.subr.bf16.mxu0 0
    %736 = vmatpush1.bf16.msra.mxu0 0
    %737 = vmatprep.subr.bf16.mxu0 0
    %738 = vmatpush1.bf16.msra.mxu0 0
    %739 = vmatprep.subr.bf16.mxu0 0
    %740 = vmatpush1.bf16.msra.mxu0 0
    %741 = vmatprep.subr.bf16.mxu0 0
    %742 = vmatpush1.bf16.msra.mxu0 0
    %743 = vmatprep.subr.bf16.mxu0 0
    %744 = vmatpush1.bf16.msra.mxu0 0
    %745 = vmatprep.subr.bf16.mxu0 0
    %746 = vmatpush1.bf16.msra.mxu0 0
    %747 = vmatprep.subr.bf16.mxu0 0
    %748 = vmatpush1.bf16.msra.mxu0 %v267
    %749 = vmatprep.subr.bf16.mxu0 0
    %750 = vmatpush1.bf16.msra.mxu0 %v266
    %751 = vmatprep.subr.bf16.mxu0 0
    %752 = vmatpush2.bf16.msra.mxu0 0
    %753 = vmatprep.subr.bf16.mxu0 0
    %754 = vmatpush2.bf16.msra.mxu0 0
    %755 = vmatprep.subr.bf16.mxu0 0
    %756 = vmatpush2.bf16.msra.mxu0 0
    %757 = vmatprep.subr.bf16.mxu0 0
    %758 = vmatpush2.bf16.msra.mxu0 0
    %759 = vmatprep.subr.bf16.mxu0 0
    %760 = vmatpush2.bf16.msra.mxu0 0
    %761 = vmatprep.subr.bf16.mxu0 0
    %762 = vmatpush2.bf16.msra.mxu0 0
    %763 = vmatprep.subr.bf16.mxu0 0
    %764 = vmatpush2.bf16.msra.mxu0 0
    %765 = vmatprep.subr.bf16.mxu0 0
    %766 = vmatpush2.bf16.msra.mxu0 0
    %767 = vmatprep.mubr.bf16.mxu0 0
    %768 = vmatmul.mubr.bf16.gmra.mxu0 %v733
    %v769 = vpop.f32.mrf.mxu0
    %v770 = vadd.f32 0.0, %v769
    %v771 = vpop.f32.mrf.mxu0
    %v772 = vpop.f32.mrf.mxu0
    %v773 = vpop.f32.mrf.mxu0
    %774 = vdwg.mxu0
    %v775 = vadd.f32 %v252, %v770
    %v776 = vxor.u32 %v775, 2147483648
    %v777 = vmul.f32 %v776, 1.442695
    %v778 = vpow.pop %v777
    %v779 = vadd.f32 %v778, 1.0
    %v780 = vrcp.pop %v779
    %v781 = vmul.f32 1.0, %v780
    %v782 = vtanh.pop %v775
    %v783 = vmul.f32 %v781, %v716
    %785 = vrot.lane.b32.xlu0 %v782, 64
    %v786 = vpop.permute.xlu0 %785
    %v788 = vmul.f32 %v781, %v786
    %790 = vrot.lane.b32.xlu0 %v788, 32
    %v791 = vpop.permute.xlu0 %790
    %v793 = vadd.f32 %v783, %v791
    %v794 = vtanh.pop %v793
    %796 = vrot.lane.b32.xlu0 %v794, 64
    %v797 = vpop.permute.xlu0 %796
    %v799 = vmul.f32 %v781, %v797
    %801 = vrot.lane.b32.xlu0 %v799, 32
    %v802 = vpop.permute.xlu0 %801
    %804 = vst.msk [vmem:[#allocation3 + $0x30] sm:$0xff] %vm70, %v802
    %v805 = vpack.c.bf16 %v799, %v799
    %807 = vrot.lane.b32.xlu0 %v805, 32
    %v808 = vpop.permute.xlu0 %807
    %v810 = vsel %vm70, %v808, 0
    %812 = vmatprep.subr.bf16.mxu0 0
    %813 = vmatpush1.bf16.msra.mxu0 0
    %814 = vmatprep.subr.bf16.mxu0 0
    %815 = vmatpush1.bf16.msra.mxu0 0
    %816 = vmatprep.subr.bf16.mxu0 0
    %817 = vmatpush1.bf16.msra.mxu0 0
    %818 = vmatprep.subr.bf16.mxu0 0
    %819 = vmatpush1.bf16.msra.mxu0 0
    %820 = vmatprep.subr.bf16.mxu0 0
    %821 = vmatpush1.bf16.msra.mxu0 0
    %822 = vmatprep.subr.bf16.mxu0 0
    %823 = vmatpush1.bf16.msra.mxu0 0
    %824 = vmatprep.subr.bf16.mxu0 0
    %825 = vmatpush1.bf16.msra.mxu0 %v267
    %826 = vmatprep.subr.bf16.mxu0 0
    %827 = vmatpush1.bf16.msra.mxu0 %v266
    %828 = vmatprep.subr.bf16.mxu0 0
    %829 = vmatpush2.bf16.msra.mxu0 0
    %830 = vmatprep.subr.bf16.mxu0 0
    %831 = vmatpush2.bf16.msra.mxu0 0
    %832 = vmatprep.subr.bf16.mxu0 0
    %833 = vmatpush2.bf16.msra.mxu0 0
    %834 = vmatprep.subr.bf16.mxu0 0
    %835 = vmatpush2.bf16.msra.mxu0 0
    %836 = vmatprep.subr.bf16.mxu0 0
    %837 = vmatpush2.bf16.msra.mxu0 0
    %838 = vmatprep.subr.bf16.mxu0 0
    %839 = vmatpush2.bf16.msra.mxu0 0
    %840 = vmatprep.subr.bf16.mxu0 0
    %841 = vmatpush2.bf16.msra.mxu0 0
    %842 = vmatprep.subr.bf16.mxu0 0
    %843 = vmatpush2.bf16.msra.mxu0 0
    %844 = vmatprep.mubr.bf16.mxu0 0
    %845 = vmatmul.mubr.bf16.gmra.mxu0 %v810
    %v846 = vpop.f32.mrf.mxu0
    %v847 = vadd.f32 0.0, %v846
    %v848 = vpop.f32.mrf.mxu0
    %v849 = vpop.f32.mrf.mxu0
    %v850 = vpop.f32.mrf.mxu0
    %851 = vdwg.mxu0
    %v852 = vadd.f32 %v255, %v847
    %v853 = vxor.u32 %v852, 2147483648
    %v854 = vmul.f32 %v853, 1.442695
    %v855 = vpow.pop %v854
    %v856 = vadd.f32 %v855, 1.0
    %v857 = vrcp.pop %v856
    %v858 = vmul.f32 1.0, %v857
    %v859 = vtanh.pop %v852
    %v860 = vmul.f32 %v858, %v793
    %862 = vrot.lane.b32.xlu0 %v859, 64
    %v863 = vpop.permute.xlu0 %862
    %v865 = vmul.f32 %v858, %v863
    %867 = vrot.lane.b32.xlu0 %v865, 32
    %v868 = vpop.permute.xlu0 %867
    %v870 = vadd.f32 %v860, %v868
    %v871 = vtanh.pop %v870
    %873 = vrot.lane.b32.xlu0 %v871, 64
    %v874 = vpop.permute.xlu0 %873
    %v876 = vmul.f32 %v858, %v874
    %878 = vrot.lane.b32.xlu0 %v876, 32
    %v879 = vpop.permute.xlu0 %878
    %881 = vst.msk [vmem:[#allocation3 + $0x38] sm:$0xff] %vm70, %v879
    %v882 = vld [vmem:[#allocation3] sm:$0xff]
    %v883 = vld [vmem:[#allocation3 + $0x8] sm:$0xff]
    %v884 = vld [vmem:[#allocation3 + $0x10] sm:$0xff]
    %v885 = vld [vmem:[#allocation3 + $0x18] sm:$0xff]
    %v886 = vld [vmem:[#allocation3 + $0x20] sm:$0xff]
    %v887 = vld [vmem:[#allocation3 + $0x28] sm:$0xff]
    %v888 = vld [vmem:[#allocation3 + $0x30] sm:$0xff]
    %v889 = vld [vmem:[#allocation3 + $0x38] sm:$0xff]
    %v890 = vld [vmem:[#allocation8 + $0x20] sm:$0xf]
    %v891 = vld [vmem:[#allocation8 + $0x24] sm:$0xf]
    %v892 = vld [vmem:[#allocation8 + $0x28] sm:$0xf]
    %v893 = vld [vmem:[#allocation8 + $0x2c] sm:$0xf]
    %v894 = vld [vmem:[#allocation8 + $0x30] sm:$0xf]
    %v895 = vld [vmem:[#allocation8 + $0x34] sm:$0xf]
    %v896 = vld [vmem:[#allocation8 + $0x38] sm:$0xf]
    %v897 = vld [vmem:[#allocation8 + $0x3c] sm:$0xf]
    %v898 = vld [vmem:[#allocation10 + $0x8] sm:$0x1]
    %v899 = vpack.c.bf16 %v883, %v882
    %v900 = vpack.c.bf16 %v885, %v884
    %v901 = vpack.c.bf16 %v887, %v886
    %v902 = vpack.c.bf16 %v889, %v888
    %v903 = vlaneseq
    %v904 = vshrl.u32 %v903, 7
    %v905 = vsub.s32 0, %v904
    %v906 = vrot.slane %v898, %v905
    %v911 = vunpack.c.l.b16 %v890
    %v912 = vunpack.c.l.b16 %v891
    %v913 = vunpack.c.l.b16 %v892
    %v914 = vunpack.c.l.b16 %v893
    %v915 = vpack.c.b16 %v912, %v911
    %v916 = vpack.c.b16 %v914, %v913
    %v920 = vsel %vm70, %v899, 0
    %v923 = vsel %vm70, %v900, 0
    %v926 = vsel %vm70, %v901, 0
    %v929 = vsel %vm70, %v902, 0
    %931 = vmatprep.subr.bf16.mxu0 0
    %932 = vmatpush1.bf16.msra.mxu0 0
    %933 = vmatprep.subr.bf16.mxu0 0
    %934 = vmatpush1.bf16.msra.mxu0 0
    %935 = vmatprep.subr.bf16.mxu0 0
    %936 = vmatpush1.bf16.msra.mxu0 0
    %937 = vmatprep.subr.bf16.mxu0 0
    %938 = vmatpush1.bf16.msra.mxu0 0
    %939 = vmatprep.subr.bf16.mxu0 0
    %940 = vmatpush1.bf16.msra.mxu0 0
    %941 = vmatprep.subr.bf16.mxu0 0
    %942 = vmatpush1.bf16.msra.mxu0 0
    %943 = vmatprep.subr.bf16.mxu0 0
    %944 = vmatpush1.bf16.msra.mxu0 %v916
    %945 = vmatprep.subr.bf16.mxu0 0
    %946 = vmatpush1.bf16.msra.mxu0 %v915
    %947 = vmatprep.subr.bf16.mxu0 0
    %948 = vmatpush2.bf16.msra.mxu0 0
    %949 = vmatprep.subr.bf16.mxu0 0
    %950 = vmatpush2.bf16.msra.mxu0 0
    %951 = vmatprep.subr.bf16.mxu0 0
    %952 = vmatpush2.bf16.msra.mxu0 0
    %953 = vmatprep.subr.bf16.mxu0 0
    %954 = vmatpush2.bf16.msra.mxu0 0
    %955 = vmatprep.subr.bf16.mxu0 0
    %956 = vmatpush2.bf16.msra.mxu0 0
    %957 = vmatprep.subr.bf16.mxu0 0
    %958 = vmatpush2.bf16.msra.mxu0 0
    %959 = vmatprep.subr.bf16.mxu0 0
    %960 = vmatpush2.bf16.msra.mxu0 0
    %961 = vmatprep.subr.bf16.mxu0 0
    %962 = vmatpush2.bf16.msra.mxu0 0
    %963 = vmatprep.mubr.bf16.mxu0 0
    %964 = vmatmul.mubr.bf16.gmra.mxu0 %v920
    %v965 = vpop.f32.mrf.mxu0
    %v966 = vadd.f32 %v906, %v965
    %v967 = vpop.f32.mrf.mxu0
    %v968 = vpop.f32.mrf.mxu0
    %v969 = vadd.f32 %v906, %v968
    %v970 = vpop.f32.mrf.mxu0
    %971 = vmatprep.mubr.bf16.mxu0 0
    %972 = vmatmul.mubr.bf16.gmra.mxu0 %v923
    %v973 = vpop.f32.mrf.mxu0
    %v974 = vadd.f32 %v906, %v973
    %v975 = vpop.f32.mrf.mxu0
    %v976 = vpop.f32.mrf.mxu0
    %v977 = vadd.f32 %v906, %v976
    %v978 = vpop.f32.mrf.mxu0
    %979 = vmatprep.mubr.bf16.mxu0 0
    %980 = vmatmul.mubr.bf16.gmra.mxu0 %v926
    %v981 = vpop.f32.mrf.mxu0
    %v982 = vadd.f32 %v906, %v981
    %v983 = vpop.f32.mrf.mxu0
    %v984 = vpop.f32.mrf.mxu0
    %v985 = vadd.f32 %v906, %v984
    %v986 = vpop.f32.mrf.mxu0
    %987 = vmatprep.mubr.bf16.mxu0 0
    %988 = vmatmul.mubr.bf16.gmra.mxu0 %v929
    %v989 = vpop.f32.mrf.mxu0
    %v990 = vadd.f32 %v906, %v989
    %v991 = vpop.f32.mrf.mxu0
    %v992 = vpop.f32.mrf.mxu0
    %v993 = vadd.f32 %v906, %v992
    %v994 = vpop.f32.mrf.mxu0
    %995 = vdwg.mxu0
    %v1000 = vunpack.c.l.b16 %v894
    %v1001 = vunpack.c.l.b16 %v895
    %v1002 = vunpack.c.l.b16 %v896
    %v1003 = vunpack.c.l.b16 %v897
    %v1004 = vpack.c.b16 %v1001, %v1000
    %v1005 = vpack.c.b16 %v1003, %v1002
    %1008 = vmatprep.subr.bf16.mxu0 0
    %1009 = vmatpush1.bf16.msra.mxu0 0
    %1010 = vmatprep.subr.bf16.mxu0 0
    %1011 = vmatpush1.bf16.msra.mxu0 0
    %1012 = vmatprep.subr.bf16.mxu0 0
    %1013 = vmatpush1.bf16.msra.mxu0 0
    %1014 = vmatprep.subr.bf16.mxu0 0
    %1015 = vmatpush1.bf16.msra.mxu0 0
    %1016 = vmatprep.subr.bf16.mxu0 0
    %1017 = vmatpush1.bf16.msra.mxu0 0
    %1018 = vmatprep.subr.bf16.mxu0 0
    %1019 = vmatpush1.bf16.msra.mxu0 0
    %1020 = vmatprep.subr.bf16.mxu0 0
    %1021 = vmatpush1.bf16.msra.mxu0 %v1005
    %1022 = vmatprep.subr.bf16.mxu0 0
    %1023 = vmatpush1.bf16.msra.mxu0 %v1004
    %1024 = vmatprep.subr.bf16.mxu0 0
    %1025 = vmatpush2.bf16.msra.mxu0 0
    %1026 = vmatprep.subr.bf16.mxu0 0
    %1027 = vmatpush2.bf16.msra.mxu0 0
    %1028 = vmatprep.subr.bf16.mxu0 0
    %1029 = vmatpush2.bf16.msra.mxu0 0
    %1030 = vmatprep.subr.bf16.mxu0 0
    %1031 = vmatpush2.bf16.msra.mxu0 0
    %1032 = vmatprep.subr.bf16.mxu0 0
    %1033 = vmatpush2.bf16.msra.mxu0 0
    %1034 = vmatprep.subr.bf16.mxu0 0
    %1035 = vmatpush2.bf16.msra.mxu0 0
    %1036 = vmatprep.subr.bf16.mxu0 0
    %1037 = vmatpush2.bf16.msra.mxu0 0
    %1038 = vmatprep.subr.bf16.mxu0 0
    %1039 = vmatpush2.bf16.msra.mxu0 0
    %1040 = vmatprep.mubr.bf16.mxu0 0
    %1041 = vmatmul.mubr.bf16.gmra.mxu0 %v271
    %v1042 = vpop.f32.mrf.mxu0
    %v1043 = vadd.f32 0.0, %v1042
    %v1044 = vpop.f32.mrf.mxu0
    %v1045 = vpop.f32.mrf.mxu0
    %v1046 = vpop.f32.mrf.mxu0
    %1047 = vdwg.mxu0
    %v1048 = vadd.f32 %v966, %v1043
    %v1049 = vxor.u32 %v1048, 2147483648
    %v1050 = vmul.f32 %v1049, 1.442695
    %v1051 = vpow.pop %v1050
    %v1052 = vadd.f32 %v1051, 1.0
    %v1053 = vrcp.pop %v1052
    %v1054 = vmul.f32 1.0, %v1053
    %v1055 = vtanh.pop %v1048
    %v1056 = vmul.f32 %v1054, 0.0
    %1058 = vrot.lane.b32.xlu0 %v1055, 64
    %v1059 = vpop.permute.xlu0 %1058
    %v1061 = vmul.f32 %v1054, %v1059
    %1063 = vrot.lane.b32.xlu0 %v1061, 32
    %v1064 = vpop.permute.xlu0 %1063
    %v1066 = vadd.f32 %v1056, %v1064
    %v1067 = vtanh.pop %v1066
    %1069 = vrot.lane.b32.xlu0 %v1067, 64
    %v1070 = vpop.permute.xlu0 %1069
    %v1072 = vmul.f32 %v1054, %v1070
    %1074 = vrot.lane.b32.xlu0 %v1072, 32
    %v1075 = vpop.permute.xlu0 %1074
    %1077 = vst.msk [vmem:[#allocation3] sm:$0xff] %vm70, %v1075
    %v1078 = vpack.c.bf16 %v1072, %v1072
    %1080 = vrot.lane.b32.xlu0 %v1078, 32
    %v1081 = vpop.permute.xlu0 %1080
    %v1083 = vsel %vm70, %v1081, 0
    %1085 = vmatprep.subr.bf16.mxu0 0
    %1086 = vmatpush1.bf16.msra.mxu0 0
    %1087 = vmatprep.subr.bf16.mxu0 0
    %1088 = vmatpush1.bf16.msra.mxu0 0
    %1089 = vmatprep.subr.bf16.mxu0 0
    %1090 = vmatpush1.bf16.msra.mxu0 0
    %1091 = vmatprep.subr.bf16.mxu0 0
    %1092 = vmatpush1.bf16.msra.mxu0 0
    %1093 = vmatprep.subr.bf16.mxu0 0
    %1094 = vmatpush1.bf16.msra.mxu0 0
    %1095 = vmatprep.subr.bf16.mxu0 0
    %1096 = vmatpush1.bf16.msra.mxu0 0
    %1097 = vmatprep.subr.bf16.mxu0 0
    %1098 = vmatpush1.bf16.msra.mxu0 %v1005
    %1099 = vmatprep.subr.bf16.mxu0 0
    %1100 = vmatpush1.bf16.msra.mxu0 %v1004
    %1101 = vmatprep.subr.bf16.mxu0 0
    %1102 = vmatpush2.bf16.msra.mxu0 0
    %1103 = vmatprep.subr.bf16.mxu0 0
    %1104 = vmatpush2.bf16.msra.mxu0 0
    %1105 = vmatprep.subr.bf16.mxu0 0
    %1106 = vmatpush2.bf16.msra.mxu0 0
    %1107 = vmatprep.subr.bf16.mxu0 0
    %1108 = vmatpush2.bf16.msra.mxu0 0
    %1109 = vmatprep.subr.bf16.mxu0 0
    %1110 = vmatpush2.bf16.msra.mxu0 0
    %1111 = vmatprep.subr.bf16.mxu0 0
    %1112 = vmatpush2.bf16.msra.mxu0 0
    %1113 = vmatprep.subr.bf16.mxu0 0
    %1114 = vmatpush2.bf16.msra.mxu0 0
    %1115 = vmatprep.subr.bf16.mxu0 0
    %1116 = vmatpush2.bf16.msra.mxu0 0
    %1117 = vmatprep.mubr.bf16.mxu0 0
    %1118 = vmatmul.mubr.bf16.gmra.mxu0 %v1083
    %v1119 = vpop.f32.mrf.mxu0
    %v1120 = vadd.f32 0.0, %v1119
    %v1121 = vpop.f32.mrf.mxu0
    %v1122 = vpop.f32.mrf.mxu0
    %v1123 = vpop.f32.mrf.mxu0
    %1124 = vdwg.mxu0
    %v1125 = vadd.f32 %v969, %v1120
    %v1126 = vxor.u32 %v1125, 2147483648
    %v1127 = vmul.f32 %v1126, 1.442695
    %v1128 = vpow.pop %v1127
    %v1129 = vadd.f32 %v1128, 1.0
    %v1130 = vrcp.pop %v1129
    %v1131 = vmul.f32 1.0, %v1130
    %v1132 = vtanh.pop %v1125
    %v1133 = vmul.f32 %v1131, %v1066
    %1135 = vrot.lane.b32.xlu0 %v1132, 64
    %v1136 = vpop.permute.xlu0 %1135
    %v1138 = vmul.f32 %v1131, %v1136
    %1140 = vrot.lane.b32.xlu0 %v1138, 32
    %v1141 = vpop.permute.xlu0 %1140
    %v1143 = vadd.f32 %v1133, %v1141
    %v1144 = vtanh.pop %v1143
    %1146 = vrot.lane.b32.xlu0 %v1144, 64
    %v1147 = vpop.permute.xlu0 %1146
    %v1149 = vmul.f32 %v1131, %v1147
    %1151 = vrot.lane.b32.xlu0 %v1149, 32
    %v1152 = vpop.permute.xlu0 %1151
    %1154 = vst.msk [vmem:[#allocation3 + $0x8] sm:$0xff] %vm70, %v1152
    %v1155 = vpack.c.bf16 %v1149, %v1149
    %1157 = vrot.lane.b32.xlu0 %v1155, 32
    %v1158 = vpop.permute.xlu0 %1157
    %v1160 = vsel %vm70, %v1158, 0
    %1162 = vmatprep.subr.bf16.mxu0 0
    %1163 = vmatpush1.bf16.msra.mxu0 0
    %1164 = vmatprep.subr.bf16.mxu0 0
    %1165 = vmatpush1.bf16.msra.mxu0 0
    %1166 = vmatprep.subr.bf16.mxu0 0
    %1167 = vmatpush1.bf16.msra.mxu0 0
    %1168 = vmatprep.subr.bf16.mxu0 0
    %1169 = vmatpush1.bf16.msra.mxu0 0
    %1170 = vmatprep.subr.bf16.mxu0 0
    %1171 = vmatpush1.bf16.msra.mxu0 0
    %1172 = vmatprep.subr.bf16.mxu0 0
    %1173 = vmatpush1.bf16.msra.mxu0 0
    %1174 = vmatprep.subr.bf16.mxu0 0
    %1175 = vmatpush1.bf16.msra.mxu0 %v1005
    %1176 = vmatprep.subr.bf16.mxu0 0
    %1177 = vmatpush1.bf16.msra.mxu0 %v1004
    %1178 = vmatprep.subr.bf16.mxu0 0
    %1179 = vmatpush2.bf16.msra.mxu0 0
    %1180 = vmatprep.subr.bf16.mxu0 0
    %1181 = vmatpush2.bf16.msra.mxu0 0
    %1182 = vmatprep.subr.bf16.mxu0 0
    %1183 = vmatpush2.bf16.msra.mxu0 0
    %1184 = vmatprep.subr.bf16.mxu0 0
    %1185 = vmatpush2.bf16.msra.mxu0 0
    %1186 = vmatprep.subr.bf16.mxu0 0
    %1187 = vmatpush2.bf16.msra.mxu0 0
    %1188 = vmatprep.subr.bf16.mxu0 0
    %1189 = vmatpush2.bf16.msra.mxu0 0
    %1190 = vmatprep.subr.bf16.mxu0 0
    %1191 = vmatpush2.bf16.msra.mxu0 0
    %1192 = vmatprep.subr.bf16.mxu0 0
    %1193 = vmatpush2.bf16.msra.mxu0 0
    %1194 = vmatprep.mubr.bf16.mxu0 0
    %1195 = vmatmul.mubr.bf16.gmra.mxu0 %v1160
    %v1196 = vpop.f32.mrf.mxu0
    %v1197 = vadd.f32 0.0, %v1196
    %v1198 = vpop.f32.mrf.mxu0
    %v1199 = vpop.f32.mrf.mxu0
    %v1200 = vpop.f32.mrf.mxu0
    %1201 = vdwg.mxu0
    %v1202 = vadd.f32 %v974, %v1197
    %v1203 = vxor.u32 %v1202, 2147483648
    %v1204 = vmul.f32 %v1203, 1.442695
    %v1205 = vpow.pop %v1204
    %v1206 = vadd.f32 %v1205, 1.0
    %v1207 = vrcp.pop %v1206
    %v1208 = vmul.f32 1.0, %v1207
    %v1209 = vtanh.pop %v1202
    %v1210 = vmul.f32 %v1208, %v1143
    %1212 = vrot.lane.b32.xlu0 %v1209, 64
    %v1213 = vpop.permute.xlu0 %1212
    %v1215 = vmul.f32 %v1208, %v1213
    %1217 = vrot.lane.b32.xlu0 %v1215, 32
    %v1218 = vpop.permute.xlu0 %1217
    %v1220 = vadd.f32 %v1210, %v1218
    %v1221 = vtanh.pop %v1220
    %1223 = vrot.lane.b32.xlu0 %v1221, 64
    %v1224 = vpop.permute.xlu0 %1223
    %v1226 = vmul.f32 %v1208, %v1224
    %1228 = vrot.lane.b32.xlu0 %v1226, 32
    %v1229 = vpop.permute.xlu0 %1228
    %1231 = vst.msk [vmem:[#allocation3 + $0x10] sm:$0xff] %vm70, %v1229
    %v1232 = vpack.c.bf16 %v1226, %v1226
    %1234 = vrot.lane.b32.xlu0 %v1232, 32
    %v1235 = vpop.permute.xlu0 %1234
    %v1237 = vsel %vm70, %v1235, 0
    %1239 = vmatprep.subr.bf16.mxu0 0
    %1240 = vmatpush1.bf16.msra.mxu0 0
    %1241 = vmatprep.subr.bf16.mxu0 0
    %1242 = vmatpush1.bf16.msra.mxu0 0
    %1243 = vmatprep.subr.bf16.mxu0 0
    %1244 = vmatpush1.bf16.msra.mxu0 0
    %1245 = vmatprep.subr.bf16.mxu0 0
    %1246 = vmatpush1.bf16.msra.mxu0 0
    %1247 = vmatprep.subr.bf16.mxu0 0
    %1248 = vmatpush1.bf16.msra.mxu0 0
    %1249 = vmatprep.subr.bf16.mxu0 0
    %1250 = vmatpush1.bf16.msra.mxu0 0
    %1251 = vmatprep.subr.bf16.mxu0 0
    %1252 = vmatpush1.bf16.msra.mxu0 %v1005
    %1253 = vmatprep.subr.bf16.mxu0 0
    %1254 = vmatpush1.bf16.msra.mxu0 %v1004
    %1255 = vmatprep.subr.bf16.mxu0 0
    %1256 = vmatpush2.bf16.msra.mxu0 0
    %1257 = vmatprep.subr.bf16.mxu0 0
    %1258 = vmatpush2.bf16.msra.mxu0 0
    %1259 = vmatprep.subr.bf16.mxu0 0
    %1260 = vmatpush2.bf16.msra.mxu0 0
    %1261 = vmatprep.subr.bf16.mxu0 0
    %1262 = vmatpush2.bf16.msra.mxu0 0
    %1263 = vmatprep.subr.bf16.mxu0 0
    %1264 = vmatpush2.bf16.msra.mxu0 0
    %1265 = vmatprep.subr.bf16.mxu0 0
    %1266 = vmatpush2.bf16.msra.mxu0 0
    %1267 = vmatprep.subr.bf16.mxu0 0
    %1268 = vmatpush2.bf16.msra.mxu0 0
    %1269 = vmatprep.subr.bf16.mxu0 0
    %1270 = vmatpush2.bf16.msra.mxu0 0
    %1271 = vmatprep.mubr.bf16.mxu0 0
    %1272 = vmatmul.mubr.bf16.gmra.mxu0 %v1237
    %v1273 = vpop.f32.mrf.mxu0
    %v1274 = vadd.f32 0.0, %v1273
    %v1275 = vpop.f32.mrf.mxu0
    %v1276 = vpop.f32.mrf.mxu0
    %v1277 = vpop.f32.mrf.mxu0
    %1278 = vdwg.mxu0
    %v1279 = vadd.f32 %v977, %v1274
    %v1280 = vxor.u32 %v1279, 2147483648
    %v1281 = vmul.f32 %v1280, 1.442695
    %v1282 = vpow.pop %v1281
    %v1283 = vadd.f32 %v1282, 1.0
    %v1284 = vrcp.pop %v1283
    %v1285 = vmul.f32 1.0, %v1284
    %v1286 = vtanh.pop %v1279
    %v1287 = vmul.f32 %v1285, %v1220
    %1289 = vrot.lane.b32.xlu0 %v1286, 64
    %v1290 = vpop.permute.xlu0 %1289
    %v1292 = vmul.f32 %v1285, %v1290
    %1294 = vrot.lane.b32.xlu0 %v1292, 32
    %v1295 = vpop.permute.xlu0 %1294
    %v1297 = vadd.f32 %v1287, %v1295
    %v1298 = vtanh.pop %v1297
    %1300 = vrot.lane.b32.xlu0 %v1298, 64
    %v1301 = vpop.permute.xlu0 %1300
    %v1303 = vmul.f32 %v1285, %v1301
    %1305 = vrot.lane.b32.xlu0 %v1303, 32
    %v1306 = vpop.permute.xlu0 %1305
    %1308 = vst.msk [vmem:[#allocation3 + $0x18] sm:$0xff] %vm70, %v1306
    %v1309 = vpack.c.bf16 %v1303, %v1303
    %1311 = vrot.lane.b32.xlu0 %v1309, 32
    %v1312 = vpop.permute.xlu0 %1311
    %v1314 = vsel %vm70, %v1312, 0
    %1316 = vmatprep.subr.bf16.mxu0 0
    %1317 = vmatpush1.bf16.msra.mxu0 0
    %1318 = vmatprep.subr.bf16.mxu0 0
    %1319 = vmatpush1.bf16.msra.mxu0 0
    %1320 = vmatprep.subr.bf16.mxu0 0
    %1321 = vmatpush1.bf16.msra.mxu0 0
    %1322 = vmatprep.subr.bf16.mxu0 0
    %1323 = vmatpush1.bf16.msra.mxu0 0
    %1324 = vmatprep.subr.bf16.mxu0 0
    %1325 = vmatpush1.bf16.msra.mxu0 0
    %1326 = vmatprep.subr.bf16.mxu0 0
    %1327 = vmatpush1.bf16.msra.mxu0 0
    %1328 = vmatprep.subr.bf16.mxu0 0
    %1329 = vmatpush1.bf16.msra.mxu0 %v1005
    %1330 = vmatprep.subr.bf16.mxu0 0
    %1331 = vmatpush1.bf16.msra.mxu0 %v1004
    %1332 = vmatprep.subr.bf16.mxu0 0
    %1333 = vmatpush2.bf16.msra.mxu0 0
    %1334 = vmatprep.subr.bf16.mxu0 0
    %1335 = vmatpush2.bf16.msra.mxu0 0
    %1336 = vmatprep.subr.bf16.mxu0 0
    %1337 = vmatpush2.bf16.msra.mxu0 0
    %1338 = vmatprep.subr.bf16.mxu0 0
    %1339 = vmatpush2.bf16.msra.mxu0 0
    %1340 = vmatprep.subr.bf16.mxu0 0
    %1341 = vmatpush2.bf16.msra.mxu0 0
    %1342 = vmatprep.subr.bf16.mxu0 0
    %1343 = vmatpush2.bf16.msra.mxu0 0
    %1344 = vmatprep.subr.bf16.mxu0 0
    %1345 = vmatpush2.bf16.msra.mxu0 0
    %1346 = vmatprep.subr.bf16.mxu0 0
    %1347 = vmatpush2.bf16.msra.mxu0 0
    %1348 = vmatprep.mubr.bf16.mxu0 0
    %1349 = vmatmul.mubr.bf16.gmra.mxu0 %v1314
    %v1350 = vpop.f32.mrf.mxu0
    %v1351 = vadd.f32 0.0, %v1350
    %v1352 = vpop.f32.mrf.mxu0
    %v1353 = vpop.f32.mrf.mxu0
    %v1354 = vpop.f32.mrf.mxu0
    %1355 = vdwg.mxu0
    %v1356 = vadd.f32 %v982, %v1351
    %v1357 = vxor.u32 %v1356, 2147483648
    %v1358 = vmul.f32 %v1357, 1.442695
    %v1359 = vpow.pop %v1358
    %v1360 = vadd.f32 %v1359, 1.0
    %v1361 = vrcp.pop %v1360
    %v1362 = vmul.f32 1.0, %v1361
    %v1363 = vtanh.pop %v1356
    %v1364 = vmul.f32 %v1362, %v1297
    %1366 = vrot.lane.b32.xlu0 %v1363, 64
    %v1367 = vpop.permute.xlu0 %1366
    %v1369 = vmul.f32 %v1362, %v1367
    %1371 = vrot.lane.b32.xlu0 %v1369, 32
    %v1372 = vpop.permute.xlu0 %1371
    %v1374 = vadd.f32 %v1364, %v1372
    %v1375 = vtanh.pop %v1374
    %1377 = vrot.lane.b32.xlu0 %v1375, 64
    %v1378 = vpop.permute.xlu0 %1377
    %v1380 = vmul.f32 %v1362, %v1378
    %1382 = vrot.lane.b32.xlu0 %v1380, 32
    %v1383 = vpop.permute.xlu0 %1382
    %1385 = vst.msk [vmem:[#allocation3 + $0x20] sm:$0xff] %vm70, %v1383
    %v1386 = vpack.c.bf16 %v1380, %v1380
    %1388 = vrot.lane.b32.xlu0 %v1386, 32
    %v1389 = vpop.permute.xlu0 %1388
    %v1391 = vsel %vm70, %v1389, 0
    %1393 = vmatprep.subr.bf16.mxu0 0
    %1394 = vmatpush1.bf16.msra.mxu0 0
    %1395 = vmatprep.subr.bf16.mxu0 0
    %1396 = vmatpush1.bf16.msra.mxu0 0
    %1397 = vmatprep.subr.bf16.mxu0 0
    %1398 = vmatpush1.bf16.msra.mxu0 0
    %1399 = vmatprep.subr.bf16.mxu0 0
    %1400 = vmatpush1.bf16.msra.mxu0 0
    %1401 = vmatprep.subr.bf16.mxu0 0
    %1402 = vmatpush1.bf16.msra.mxu0 0
    %1403 = vmatprep.subr.bf16.mxu0 0
    %1404 = vmatpush1.bf16.msra.mxu0 0
    %1405 = vmatprep.subr.bf16.mxu0 0
    %1406 = vmatpush1.bf16.msra.mxu0 %v1005
    %1407 = vmatprep.subr.bf16.mxu0 0
    %1408 = vmatpush1.bf16.msra.mxu0 %v1004
    %1409 = vmatprep.subr.bf16.mxu0 0
    %1410 = vmatpush2.bf16.msra.mxu0 0
    %1411 = vmatprep.subr.bf16.mxu0 0
    %1412 = vmatpush2.bf16.msra.mxu0 0
    %1413 = vmatprep.subr.bf16.mxu0 0
    %1414 = vmatpush2.bf16.msra.mxu0 0
    %1415 = vmatprep.subr.bf16.mxu0 0
    %1416 = vmatpush2.bf16.msra.mxu0 0
    %1417 = vmatprep.subr.bf16.mxu0 0
    %1418 = vmatpush2.bf16.msra.mxu0 0
    %1419 = vmatprep.subr.bf16.mxu0 0
    %1420 = vmatpush2.bf16.msra.mxu0 0
    %1421 = vmatprep.subr.bf16.mxu0 0
    %1422 = vmatpush2.bf16.msra.mxu0 0
    %1423 = vmatprep.subr.bf16.mxu0 0
    %1424 = vmatpush2.bf16.msra.mxu0 0
    %1425 = vmatprep.mubr.bf16.mxu0 0
    %1426 = vmatmul.mubr.bf16.gmra.mxu0 %v1391
    %v1427 = vpop.f32.mrf.mxu0
    %v1428 = vadd.f32 0.0, %v1427
    %v1429 = vpop.f32.mrf.mxu0
    %v1430 = vpop.f32.mrf.mxu0
    %v1431 = vpop.f32.mrf.mxu0
    %1432 = vdwg.mxu0
    %v1433 = vadd.f32 %v985, %v1428
    %v1434 = vxor.u32 %v1433, 2147483648
    %v1435 = vmul.f32 %v1434, 1.442695
    %v1436 = vpow.pop %v1435
    %v1437 = vadd.f32 %v1436, 1.0
    %v1438 = vrcp.pop %v1437
    %v1439 = vmul.f32 1.0, %v1438
    %v1440 = vtanh.pop %v1433
    %v1441 = vmul.f32 %v1439, %v1374
    %1443 = vrot.lane.b32.xlu0 %v1440, 64
    %v1444 = vpop.permute.xlu0 %1443
    %v1446 = vmul.f32 %v1439, %v1444
    %1448 = vrot.lane.b32.xlu0 %v1446, 32
    %v1449 = vpop.permute.xlu0 %1448
    %v1451 = vadd.f32 %v1441, %v1449
    %v1452 = vtanh.pop %v1451
    %1454 = vrot.lane.b32.xlu0 %v1452, 64
    %v1455 = vpop.permute.xlu0 %1454
    %v1457 = vmul.f32 %v1439, %v1455
    %1459 = vrot.lane.b32.xlu0 %v1457, 32
    %v1460 = vpop.permute.xlu0 %1459
    %1462 = vst.msk [vmem:[#allocation3 + $0x28] sm:$0xff] %vm70, %v1460
    %v1463 = vpack.c.bf16 %v1457, %v1457
    %1465 = vrot.lane.b32.xlu0 %v1463, 32
    %v1466 = vpop.permute.xlu0 %1465
    %v1468 = vsel %vm70, %v1466, 0
    %1470 = vmatprep.subr.bf16.mxu0 0
    %1471 = vmatpush1.bf16.msra.mxu0 0
    %1472 = vmatprep.subr.bf16.mxu0 0
    %1473 = vmatpush1.bf16.msra.mxu0 0
    %1474 = vmatprep.subr.bf16.mxu0 0
    %1475 = vmatpush1.bf16.msra.mxu0 0
    %1476 = vmatprep.subr.bf16.mxu0 0
    %1477 = vmatpush1.bf16.msra.mxu0 0
    %1478 = vmatprep.subr.bf16.mxu0 0
    %1479 = vmatpush1.bf16.msra.mxu0 0
    %1480 = vmatprep.subr.bf16.mxu0 0
    %1481 = vmatpush1.bf16.msra.mxu0 0
    %1482 = vmatprep.subr.bf16.mxu0 0
    %1483 = vmatpush1.bf16.msra.mxu0 %v1005
    %1484 = vmatprep.subr.bf16.mxu0 0
    %1485 = vmatpush1.bf16.msra.mxu0 %v1004
    %1486 = vmatprep.subr.bf16.mxu0 0
    %1487 = vmatpush2.bf16.msra.mxu0 0
    %1488 = vmatprep.subr.bf16.mxu0 0
    %1489 = vmatpush2.bf16.msra.mxu0 0
    %1490 = vmatprep.subr.bf16.mxu0 0
    %1491 = vmatpush2.bf16.msra.mxu0 0
    %1492 = vmatprep.subr.bf16.mxu0 0
    %1493 = vmatpush2.bf16.msra.mxu0 0
    %1494 = vmatprep.subr.bf16.mxu0 0
    %1495 = vmatpush2.bf16.msra.mxu0 0
    %1496 = vmatprep.subr.bf16.mxu0 0
    %1497 = vmatpush2.bf16.msra.mxu0 0
    %1498 = vmatprep.subr.bf16.mxu0 0
    %1499 = vmatpush2.bf16.msra.mxu0 0
    %1500 = vmatprep.subr.bf16.mxu0 0
    %1501 = vmatpush2.bf16.msra.mxu0 0
    %1502 = vmatprep.mubr.bf16.mxu0 0
    %1503 = vmatmul.mubr.bf16.gmra.mxu0 %v1468
    %v1504 = vpop.f32.mrf.mxu0
    %v1505 = vadd.f32 0.0, %v1504
    %v1506 = vpop.f32.mrf.mxu0
    %v1507 = vpop.f32.mrf.mxu0
    %v1508 = vpop.f32.mrf.mxu0
    %1509 = vdwg.mxu0
    %v1510 = vadd.f32 %v990, %v1505
    %v1511 = vxor.u32 %v1510, 2147483648
    %v1512 = vmul.f32 %v1511, 1.442695
    %v1513 = vpow.pop %v1512
    %v1514 = vadd.f32 %v1513, 1.0
    %v1515 = vrcp.pop %v1514
    %v1516 = vmul.f32 1.0, %v1515
    %v1517 = vtanh.pop %v1510
    %v1518 = vmul.f32 %v1516, %v1451
    %1520 = vrot.lane.b32.xlu0 %v1517, 64
    %v1521 = vpop.permute.xlu0 %1520
    %v1523 = vmul.f32 %v1516, %v1521
    %1525 = vrot.lane.b32.xlu0 %v1523, 32
    %v1526 = vpop.permute.xlu0 %1525
    %v1528 = vadd.f32 %v1518, %v1526
    %v1529 = vtanh.pop %v1528
    %1531 = vrot.lane.b32.xlu0 %v1529, 64
    %v1532 = vpop.permute.xlu0 %1531
    %v1534 = vmul.f32 %v1516, %v1532
    %1536 = vrot.lane.b32.xlu0 %v1534, 32
    %v1537 = vpop.permute.xlu0 %1536
    %1539 = vst.msk [vmem:[#allocation3 + $0x30] sm:$0xff] %vm70, %v1537
    %v1540 = vpack.c.bf16 %v1534, %v1534
    %1542 = vrot.lane.b32.xlu0 %v1540, 32
    %v1543 = vpop.permute.xlu0 %1542
    %v1545 = vsel %vm70, %v1543, 0
    %1547 = vmatprep.subr.bf16.mxu0 0
    %1548 = vmatpush1.bf16.msra.mxu0 0
    %1549 = vmatprep.subr.bf16.mxu0 0
    %1550 = vmatpush1.bf16.msra.mxu0 0
    %1551 = vmatprep.subr.bf16.mxu0 0
    %1552 = vmatpush1.bf16.msra.mxu0 0
    %1553 = vmatprep.subr.bf16.mxu0 0
    %1554 = vmatpush1.bf16.msra.mxu0 0
    %1555 = vmatprep.subr.bf16.mxu0 0
    %1556 = vmatpush1.bf16.msra.mxu0 0
    %1557 = vmatprep.subr.bf16.mxu0 0
    %1558 = vmatpush1.bf16.msra.mxu0 0
    %1559 = vmatprep.subr.bf16.mxu0 0
    %1560 = vmatpush1.bf16.msra.mxu0 %v1005
    %1561 = vmatprep.subr.bf16.mxu0 0
    %1562 = vmatpush1.bf16.msra.mxu0 %v1004
    %1563 = vmatprep.subr.bf16.mxu0 0
    %1564 = vmatpush2.bf16.msra.mxu0 0
    %1565 = vmatprep.subr.bf16.mxu0 0
    %1566 = vmatpush2.bf16.msra.mxu0 0
    %1567 = vmatprep.subr.bf16.mxu0 0
    %1568 = vmatpush2.bf16.msra.mxu0 0
    %1569 = vmatprep.subr.bf16.mxu0 0
    %1570 = vmatpush2.bf16.msra.mxu0 0
    %1571 = vmatprep.subr.bf16.mxu0 0
    %1572 = vmatpush2.bf16.msra.mxu0 0
    %1573 = vmatprep.subr.bf16.mxu0 0
    %1574 = vmatpush2.bf16.msra.mxu0 0
    %1575 = vmatprep.subr.bf16.mxu0 0
    %1576 = vmatpush2.bf16.msra.mxu0 0
    %1577 = vmatprep.subr.bf16.mxu0 0
    %1578 = vmatpush2.bf16.msra.mxu0 0
    %1579 = vmatprep.mubr.bf16.mxu0 0
    %1580 = vmatmul.mubr.bf16.gmra.mxu0 %v1545
    %v1581 = vpop.f32.mrf.mxu0
    %v1582 = vadd.f32 0.0, %v1581
    %v1583 = vpop.f32.mrf.mxu0
    %v1584 = vpop.f32.mrf.mxu0
    %v1585 = vpop.f32.mrf.mxu0
    %1586 = vdwg.mxu0
    %v1587 = vadd.f32 %v993, %v1582
    %v1588 = vxor.u32 %v1587, 2147483648
    %v1589 = vmul.f32 %v1588, 1.442695
    %v1590 = vpow.pop %v1589
    %v1591 = vadd.f32 %v1590, 1.0
    %v1592 = vrcp.pop %v1591
    %v1593 = vmul.f32 1.0, %v1592
    %v1594 = vtanh.pop %v1587
    %v1595 = vmul.f32 %v1593, %v1528
    %1597 = vrot.lane.b32.xlu0 %v1594, 64
    %v1598 = vpop.permute.xlu0 %1597
    %v1600 = vmul.f32 %v1593, %v1598
    %1602 = vrot.lane.b32.xlu0 %v1600, 32
    %v1603 = vpop.permute.xlu0 %1602
    %v1605 = vadd.f32 %v1595, %v1603
    %v1606 = vtanh.pop %v1605
    %1608 = vrot.lane.b32.xlu0 %v1606, 64
    %v1609 = vpop.permute.xlu0 %1608
    %v1611 = vmul.f32 %v1593, %v1609
    %1613 = vrot.lane.b32.xlu0 %v1611, 32
    %v1614 = vpop.permute.xlu0 %1613
    %1616 = vst.msk [vmem:[#allocation3 + $0x38] sm:$0xff] %vm70, %v1614
    %v1617 = vld [vmem:[#allocation10 + $0x48] sm:$0xff]
    %v1618 = vld [vmem:[#allocation10 + $0x50] sm:$0xff]
    %v1619 = vld [vmem:[#allocation10 + $0x58] sm:$0xff]
    %v1620 = vld [vmem:[#allocation10 + $0x60] sm:$0xff]
    %v1621 = vld [vmem:[#allocation10 + $0x68] sm:$0x1]
    %v1622 = vlaneseq
    %v1623 = vshrl.u32 %v1622, 7
    %v1624 = vsub.s32 0, %v1623
    %v1625 = vrot.slane %v1621, %v1624
    %v1626 = vsel %vm70, %v1614, 0
    %1628 = vmatprep.subr.mxu0 0.0
    %1629 = vmatpush1.msra.mxu0 0.0
    %1630 = vmatprep.subr.mxu0 0.0
    %1631 = vmatpush1.msra.mxu0 0.0
    %1632 = vmatprep.subr.mxu0 0.0
    %1633 = vmatpush1.msra.mxu0 0.0
    %1634 = vmatprep.subr.mxu0 0.0
    %1635 = vmatpush1.msra.mxu0 0.0
    %1636 = vmatprep.subr.mxu0 0.0
    %1637 = vmatpush1.msra.mxu0 0.0
    %1638 = vmatprep.subr.mxu0 0.0
    %1639 = vmatpush1.msra.mxu0 0.0
    %1640 = vmatprep.subr.mxu0 0.0
    %1641 = vmatpush1.msra.mxu0 0.0
    %1642 = vmatprep.subr.mxu0 0.0
    %1643 = vmatpush1.msra.mxu0 0.0
    %1644 = vmatprep.subr.mxu0 0.0
    %1645 = vmatpush1.msra.mxu0 0.0
    %1646 = vmatprep.subr.mxu0 0.0
    %1647 = vmatpush1.msra.mxu0 0.0
    %1648 = vmatprep.subr.mxu0 0.0
    %1649 = vmatpush1.msra.mxu0 0.0
    %1650 = vmatprep.subr.mxu0 0.0
    %1651 = vmatpush1.msra.mxu0 0.0
    %1652 = vmatprep.subr.mxu0 0.0
    %1653 = vmatpush1.msra.mxu0 %v1620
    %1654 = vmatprep.subr.mxu0 0.0
    %1655 = vmatpush1.msra.mxu0 %v1619
    %1656 = vmatprep.subr.mxu0 0.0
    %1657 = vmatpush1.msra.mxu0 %v1618
    %1658 = vmatprep.subr.mxu0 0.0
    %1659 = vmatpush1.msra.mxu0 %v1617
    %1660 = vmatprep.subr.mxu0 0.0
    %1661 = vmatpush2.msra.mxu0 0.0
    %1662 = vmatprep.subr.mxu0 0.0
    %1663 = vmatpush2.msra.mxu0 0.0
    %1664 = vmatprep.subr.mxu0 0.0
    %1665 = vmatpush2.msra.mxu0 0.0
    %1666 = vmatprep.subr.mxu0 0.0
    %1667 = vmatpush2.msra.mxu0 0.0
    %1668 = vmatprep.subr.mxu0 0.0
    %1669 = vmatpush2.msra.mxu0 0.0
    %1670 = vmatprep.subr.mxu0 0.0
    %1671 = vmatpush2.msra.mxu0 0.0
    %1672 = vmatprep.subr.mxu0 0.0
    %1673 = vmatpush2.msra.mxu0 0.0
    %1674 = vmatprep.subr.mxu0 0.0
    %1675 = vmatpush2.msra.mxu0 0.0
    %1676 = vmatprep.subr.mxu0 0.0
    %1677 = vmatpush2.msra.mxu0 0.0
    %1678 = vmatprep.subr.mxu0 0.0
    %1679 = vmatpush2.msra.mxu0 0.0
    %1680 = vmatprep.subr.mxu0 0.0
    %1681 = vmatpush2.msra.mxu0 0.0
    %1682 = vmatprep.subr.mxu0 0.0
    %1683 = vmatpush2.msra.mxu0 0.0
    %1684 = vmatprep.subr.mxu0 0.0
    %1685 = vmatpush2.msra.mxu0 0.0
    %1686 = vmatprep.subr.mxu0 0.0
    %1687 = vmatpush2.msra.mxu0 0.0
    %1688 = vmatprep.subr.mxu0 0.0
    %1689 = vmatpush2.msra.mxu0 0.0
    %1690 = vmatprep.subr.mxu0 0.0
    %1691 = vmatpush2.msra.mxu0 0.0
    %1692 = vmatprep.mubr.f32.mxu0 0.0
    %1693 = vmatmul.mubr.f32.gmra.mxu0 %v1626
    %v1694 = vpop.f32.mrf.mxu0
    %v1695 = vadd.f32 %v1625, %v1694
    %v1696 = vpop.f32.mrf.mxu0
    %1697 = vdwg.mxu0
    %1698 = vst [vmem:[%s4] sm:$0xff] %v1695
    // Predicated region
    $region34: #{forward.1} parent=1 // pred_check
      _
    $region35: #{forward.1} parent=1 // pred_check_branch
      %1700 = sbr.rel (0) target = $region37
    $region36: #{forward.1} parent=1 // pred_region
      _
    $region37: #{forward.1} parent=1 // pred_fallthru
      _
    // Predicated region
    $region38: #{forward.1} parent=1 // pred_check
      _
    $region39: #{forward.1} parent=1 // pred_check_branch
      %1702 = sbr.rel (0) target = $region41
    $region40: #{forward.1} parent=1 // pred_region
      _
    $region41: #{forward.1} parent=1 // pred_fallthru
      _
    %1703 = vsyncpa [#allocation5], 1
    %1704 = vsyncpa [#allocation9], 1
    %1705 = vsyncpa [#allocation6], 1

</llo_original>
